<compile_context>
chip_gen: v7x
topology: tpu7x:2x2x1
jax: 0.10.0
libtpu: 0.0.40
codegen_flags: <defaults>
</compile_context>

<pallas_src>
import functools

import jax
import jax.numpy as jnp
import numpy as np
from jax.experimental import pallas as pl
from jax.experimental.pallas import tpu as pltpu


# ----------------------------------------------------------------------------
# Fused kernel: spatial_attention(C) + kernel-prediction apply, per sample.
# ----------------------------------------------------------------------------
def _kpn_kernel(x_ref, c_ref, w1_ref, b1_ref, w2_ref, b2_ref, w3_ref, b3_ref,
                o_ref, cpad_ref, tpad_ref, xpad_ref, *, k, H, W, PAD):
    f32 = jnp.float32
    HW = H * W

    # Column masks: a tap shifted by `ow` columns wraps into the neighbouring
    # row in the flattened (H*W) layout; mask those lanes to zero.  Row
    # over/underflow lands in the zero-padded region of the scratch buffers,
    # so no row mask is needed.
    col = jax.lax.broadcasted_iota(jnp.int32, (1, HW), 1) % W
    r_all = max(1, k // 2)
    masks = {ow: ((col + ow >= 0) & (col + ow < W)).astype(f32)
             for ow in range(-r_all, r_all + 1)}

    def patches(pad_ref, ks):
        """pad_ref holds a (C, HW) map at lane offset PAD with zero borders.
        Returns the (ks*ks*C, HW) patch matrix, rows ordered (kh, kw, c)."""
        r = ks // 2
        v = pad_ref[...]                       # (C, PAD + HW + PAD)
        pieces = []
        for kh in range(ks):
            for kw in range(ks):
                oh, ow = kh - r, kw - r
                s = PAD + oh * W + ow          # static lane offset
                piece = v[:, s:s + HW]
                if ow != 0:
                    piece = piece * masks[ow]
                pieces.append(piece)
        return jnp.concatenate(pieces, axis=0)

    # Zero the padded scratch buffers: borders act as conv zero-padding.
    cpad_ref[...] = jnp.zeros_like(cpad_ref)
    tpad_ref[...] = jnp.zeros_like(tpad_ref)
    xpad_ref[...] = jnp.zeros_like(xpad_ref)

    # ---- spatial_attention(C): Conv3x3 + ReLU -> Convkxk + ReLU -> Conv1x1 ----
    cpad_ref[:, PAD:PAD + HW] = c_ref[0]                       # (cond_ch, HW)
    t = jnp.dot(w1_ref[...], patches(cpad_ref, 3),
                preferred_element_type=f32) + b1_ref[...]
    t = jnp.maximum(t, 0.0)

    tpad_ref[:, PAD:PAD + HW] = t
    t = jnp.dot(w2_ref[...], patches(tpad_ref, k),
                preferred_element_type=f32) + b2_ref[...]
    t = jnp.maximum(t, 0.0)

    atw = jnp.dot(w3_ref[...], t, preferred_element_type=f32) + b3_ref[...]  # (k*k, HW)

    # ---- kernel-prediction apply ----
    # The attention weights are tiled over the n input channels in the
    # reference, so summing x over channels first is mathematically identical.
    xs = jnp.sum(x_ref[0], axis=0, keepdims=True)              # (1, HW)
    xpad_ref[:, PAD:PAD + HW] = xs
    xp = patches(xpad_ref, k)                                  # (k*k, HW)
    y = jnp.sum(atw * xp, axis=0, keepdims=True)               # (1, HW)
    o_ref[0] = y.astype(o_ref.dtype)


# ----------------------------------------------------------------------------
# Wrapper: layout prep + pallas_call
# ----------------------------------------------------------------------------
def kpn_forward(params, x, C, *, kernel_size=3, stride=1, padding=1):
    b, n, H, W = x.shape
    bc, cond_ch, Hc, Wc = C.shape
    assert bc == b and (Hc, Wc) == (H, W)
    k = kernel_size
    # TODO(synk): general stride / padding of the PyTorch module not implemented.
    assert stride == 1 and k % 2 == 1 and padding == k // 2

    HW = H * W
    kk = k * k
    rmax = max(1, k // 2)
    PAD = ((rmax * (W + 1) + 127) // 128) * 128      # lane-aligned flat halo
    HWP = HW + 2 * PAD

    # Lane-dense layout: channels on sublanes, flattened H*W on the lane axis.
    x_flat = x.reshape(b, n, HW)
    c_flat = C.reshape(b, cond_ch, HW)

    # Conv weights as (Cout, k*k*Cin) matmul matrices; column = (kh*k+kw)*Cin+ci.
    w1m = jnp.transpose(params['w1'], (0, 2, 3, 1)).reshape(cond_ch, 9 * cond_ch)
    w2m = jnp.transpose(params['w2'], (0, 2, 3, 1)).reshape(kk, kk * cond_ch)
    w3m = params['w3'][:, :, 0, 0]                    # (k*k, k*k)
    b1 = params['b1'].reshape(cond_ch, 1)
    b2 = params['b2'].reshape(kk, 1)
    b3 = params['b3'].reshape(kk, 1)

    kernel = functools.partial(_kpn_kernel, k=k, H=H, W=W, PAD=PAD)
    out = pl.pallas_call(
        kernel,
        out_shape=jax.ShapeDtypeStruct((b, 1, HW), jnp.float32),
        grid=(b,),
        in_specs=[
            pl.BlockSpec((1, n, HW), lambda i: (i, 0, 0)),
            pl.BlockSpec((1, cond_ch, HW), lambda i: (i, 0, 0)),
            pl.BlockSpec((cond_ch, 9 * cond_ch), lambda i: (0, 0)),
            pl.BlockSpec((cond_ch, 1), lambda i: (0, 0)),
            pl.BlockSpec((kk, kk * cond_ch), lambda i: (0, 0)),
            pl.BlockSpec((kk, 1), lambda i: (0, 0)),
            pl.BlockSpec((kk, kk), lambda i: (0, 0)),
            pl.BlockSpec((kk, 1), lambda i: (0, 0)),
        ],
        out_specs=pl.BlockSpec((1, 1, HW), lambda i: (i, 0, 0)),
        scratch_shapes=[
            pltpu.VMEM((cond_ch, HWP), jnp.float32),   # padded condition maps
            pltpu.VMEM((cond_ch, HWP), jnp.float32),   # padded conv1 output
            pltpu.VMEM((1, HWP), jnp.float32),         # padded channel-summed x
        ],
        compiler_params=pltpu.CompilerParams(dimension_semantics=("parallel",)),
    )(x_flat, c_flat, w1m, b1, w2m, b2, w3m, b3)
    return out.reshape(b, 1, H, W)


# ----------------------------------------------------------------------------
# Deterministic torch-like parameter init
# ----------------------------------------------------------------------------
def _conv_params(key, cout, cin, kh, kw):
    wkey, bkey = jax.random.split(key)
    bound = 1.0 / np.sqrt(cin * kh * kw)
    w = jax.random.uniform(wkey, (cout, cin, kh, kw), jnp.float32, -bound, bound)
    b = jax.random.uniform(bkey, (cout,), jnp.float32, -bound, bound)
    return w, b


def init_kpn(key, condition_channels, kernel_size):
    k1, k2, k3 = jax.random.split(key, 3)
    kk = kernel_size * kernel_size
    w1, b1 = _conv_params(k1, condition_channels, condition_channels, 3, 3)
    w2, b2 = _conv_params(k2, kk, condition_channels, kernel_size, kernel_size)
    w3, b3 = _conv_params(k3, kk, kk, 1, 1)
    return dict(w1=w1, b1=b1, w2=w2, b2=b2, w3=w3, b3=b3)


# ----------------------------------------------------------------------------
# Pure-JAX (XLA) mirror of the PyTorch forward, for correctness checking.
# ----------------------------------------------------------------------------
def kpn_reference(params, x, C, *, kernel_size=3, stride=1, padding=1):
    b, n, H, W = x.shape
    k = kernel_size

    def conv2d(v, w, bias, s, p):
        out = jax.lax.conv_general_dilated(
            v, w, window_strides=(s, s), padding=((p, p), (p, p)),
            dimension_numbers=('NCHW', 'OIHW', 'NCHW'))
        return out + bias[None, :, None, None]

    a = jax.nn.relu(conv2d(C, params['w1'], params['b1'], 1, 1))
    a = jax.nn.relu(conv2d(a, params['w2'], params['b2'], stride, padding))
    a = conv2d(a, params['w3'], params['b3'], 1, 0)            # (b, k*k, nH, nW)
    nH, nW = a.shape[2], a.shape[3]

    # F.unfold(x, k, stride, padding): rows ordered c-major, then (kh, kw).
    xp = jnp.pad(x, ((0, 0), (0, 0), (padding, padding), (padding, padding)))
    cols = []
    for c in range(n):
        for kh in range(k):
            for kw in range(k):
                cols.append(xp[:, c,
                               kh:kh + (nH - 1) * stride + 1:stride,
                               kw:kw + (nW - 1) * stride + 1:stride])
    kx = jnp.stack(cols, axis=1).reshape(b, n * k * k, nH * nW)

    atw = jnp.tile(a.reshape(b, k * k, nH * nW), (1, n, 1))    # torch .repeat over channels
    y = jnp.sum(atw * kx, axis=1)
    return y.reshape(b, 1, nH, nW)


if __name__ == "__main__":
    key = jax.random.PRNGKey(0)
    pkey, xkey, ckey = jax.random.split(key, 3)

    b, n, H, W = 2, 4, 16, 16          # x: (batch, channels_in, H, W)
    cond_ch = 4                        # condition feature channels
    ksize = 3                          # KPN kernel_size (stride=1, padding=1)

    params = init_kpn(pkey, cond_ch, ksize)
    x = jax.random.normal(xkey, (b, n, H, W), jnp.float32)
    C = jax.random.normal(ckey, (b, cond_ch, H, W), jnp.float32)

    fwd = jax.jit(functools.partial(kpn_forward, kernel_size=ksize,
                                    stride=1, padding=1))
    y = jax.block_until_ready(fwd(params, x, C))

    assert y.shape == (b, 1, H, W) and y.dtype == jnp.float32
    assert bool(jnp.all(jnp.isfinite(y)))

    # Cross-check against the pure-JAX mirror of the PyTorch forward.
    y_ref = kpn_reference(params, x, C, kernel_size=ksize, stride=1, padding=1)
    np.testing.assert_allclose(np.asarray(y), np.asarray(y_ref),
                               rtol=5e-4, atol=5e-4)

    print("KERNEL_OK")
</pallas_src>

<mosaic_0001>
module attributes {stable_mosaic.version = 11 : i64} {
  func.func @_kpn_kernel(%arg0: i32, %arg1: memref<1x4x256xf32, #tpu.memory_space<vmem>>, %arg2: memref<1x4x256xf32, #tpu.memory_space<vmem>>, %arg3: memref<4x36xf32, #tpu.memory_space<vmem>>, %arg4: memref<4x1xf32, #tpu.memory_space<vmem>>, %arg5: memref<9x36xf32, #tpu.memory_space<vmem>>, %arg6: memref<9x1xf32, #tpu.memory_space<vmem>>, %arg7: memref<9x9xf32, #tpu.memory_space<vmem>>, %arg8: memref<9x1xf32, #tpu.memory_space<vmem>>, %arg9: memref<1x1x256xf32, #tpu.memory_space<vmem>>, %arg10: memref<4x512xf32, #tpu.memory_space<vmem>>, %arg11: memref<4x512xf32, #tpu.memory_space<vmem>>, %arg12: memref<1x512xf32, #tpu.memory_space<vmem>>) attributes {dimension_semantics = [#tpu.dimension_semantics<parallel>], iteration_bounds = array<i64: 2>, scalar_prefetch = 0 : i64, scratch_operands = 3 : i64, tpu.core_type = #tpu.core_type<tc>, window_params = [{transform_indices = @transform_0, window_bounds = array<i64: 1, 4, 256>}, {transform_indices = @transform_1, window_bounds = array<i64: 1, 4, 256>}, {pipeline_mode = #tpu.pipeline_mode<synchronous>, transform_indices = @transform_2, window_bounds = array<i64: 4, 36>}, {pipeline_mode = #tpu.pipeline_mode<synchronous>, transform_indices = @transform_3, window_bounds = array<i64: 4, 1>}, {pipeline_mode = #tpu.pipeline_mode<synchronous>, transform_indices = @transform_4, window_bounds = array<i64: 9, 36>}, {pipeline_mode = #tpu.pipeline_mode<synchronous>, transform_indices = @transform_5, window_bounds = array<i64: 9, 1>}, {pipeline_mode = #tpu.pipeline_mode<synchronous>, transform_indices = @transform_6, window_bounds = array<i64: 9, 9>}, {pipeline_mode = #tpu.pipeline_mode<synchronous>, transform_indices = @transform_7, window_bounds = array<i64: 9, 1>}, {transform_indices = @transform_8, window_bounds = array<i64: 1, 1, 256>}]} {
    %0 = tpu.iota {dimensions = array<i32: 1>} : vector<1x256xi32>
    %c16_i32 = arith.constant 16 : i32
    %c0_i32 = arith.constant 0 : i32
    %1 = arith.cmpi eq, %c16_i32, %c0_i32 : i32
    %c1_i32 = arith.constant 1 : i32
    %2 = arith.select %1, %c1_i32, %c16_i32 : i32
    %3 = vector.broadcast %2 : i32 to vector<1x256xi32>
    %4 = arith.remsi %0, %3 : vector<1x256xi32>
    %c0_i32_0 = arith.constant 0 : i32
    %5 = vector.broadcast %c0_i32_0 : i32 to vector<1x256xi32>
    %6 = arith.cmpi ne, %4, %5 : vector<1x256xi32>
    %c0_i32_1 = arith.constant 0 : i32
    %7 = vector.broadcast %c0_i32_1 : i32 to vector<1x256xi32>
    %8 = arith.cmpi slt, %4, %7 : vector<1x256xi32>
    %c0_i32_2 = arith.constant 0 : i32
    %9 = arith.cmpi slt, %2, %c0_i32_2 : i32
    %10 = vector.broadcast %9 : i1 to vector<1x256xi1>
    %11 = vector.broadcast %10 : vector<1x256xi1> to vector<1x256xi1>
    %12 = arith.xori %8, %11 : vector<1x256xi1>
    %13 = arith.andi %12, %6 : vector<1x256xi1>
    %14 = vector.broadcast %2 : i32 to vector<1x256xi32>
    %15 = arith.addi %4, %14 : vector<1x256xi32>
    %16 = arith.select %13, %15, %4 : vector<1x256xi1>, vector<1x256xi32>
    %c-1_i32 = arith.constant -1 : i32
    %17 = vector.broadcast %c-1_i32 : i32 to vector<1x256xi32>
    %18 = arith.addi %16, %17 : vector<1x256xi32>
    %c0_i32_3 = arith.constant 0 : i32
    %19 = vector.broadcast %c0_i32_3 : i32 to vector<1x256xi32>
    %20 = arith.cmpi sge, %18, %19 : vector<1x256xi32>
    %c-1_i32_4 = arith.constant -1 : i32
    %21 = vector.broadcast %c-1_i32_4 : i32 to vector<1x256xi32>
    %22 = arith.addi %16, %21 : vector<1x256xi32>
    %c16_i32_5 = arith.constant 16 : i32
    %23 = vector.broadcast %c16_i32_5 : i32 to vector<1x256xi32>
    %24 = arith.cmpi slt, %22, %23 : vector<1x256xi32>
    %25 = arith.andi %20, %24 : vector<1x256xi1>
    %26 = arith.extui %25 : vector<1x256xi1> to vector<1x256xi32>
    %27 = arith.sitofp %26 : vector<1x256xi32> to vector<1x256xf32>
    %c1_i32_6 = arith.constant 1 : i32
    %28 = vector.broadcast %c1_i32_6 : i32 to vector<1x256xi32>
    %29 = arith.addi %16, %28 : vector<1x256xi32>
    %c0_i32_7 = arith.constant 0 : i32
    %30 = vector.broadcast %c0_i32_7 : i32 to vector<1x256xi32>
    %31 = arith.cmpi sge, %29, %30 : vector<1x256xi32>
    %c1_i32_8 = arith.constant 1 : i32
    %32 = vector.broadcast %c1_i32_8 : i32 to vector<1x256xi32>
    %33 = arith.addi %16, %32 : vector<1x256xi32>
    %c16_i32_9 = arith.constant 16 : i32
    %34 = vector.broadcast %c16_i32_9 : i32 to vector<1x256xi32>
    %35 = arith.cmpi slt, %33, %34 : vector<1x256xi32>
    %36 = arith.andi %31, %35 : vector<1x256xi1>
    %37 = arith.extui %36 : vector<1x256xi1> to vector<1x256xi32>
    %38 = arith.sitofp %37 : vector<1x256xi32> to vector<1x256xf32>
    %cst = arith.constant 0.000000e+00 : f32
    %39 = vector.broadcast %cst : f32 to vector<4x512xf32>
    %c0 = arith.constant 0 : index
    %c0_10 = arith.constant 0 : index
    %40 = vector.load %arg10[%c0, %c0_10] : memref<4x512xf32, #tpu.memory_space<vmem>>, vector<4x512xf32>
    tpu.vector_store %arg10[%c0, %c0_10], %39 {strides = array<i32>} : memref<4x512xf32, #tpu.memory_space<vmem>>, vector<4x512xf32>,
    %cst_11 = arith.constant 0.000000e+00 : f32
    %41 = vector.broadcast %cst_11 : f32 to vector<4x512xf32>
    %c0_12 = arith.constant 0 : index
    %c0_13 = arith.constant 0 : index
    %42 = vector.load %arg11[%c0_12, %c0_13] : memref<4x512xf32, #tpu.memory_space<vmem>>, vector<4x512xf32>
    tpu.vector_store %arg11[%c0_12, %c0_13], %41 {strides = array<i32>} : memref<4x512xf32, #tpu.memory_space<vmem>>, vector<4x512xf32>,
    %cst_14 = arith.constant 0.000000e+00 : f32
    %43 = vector.broadcast %cst_14 : f32 to vector<1x512xf32>
    %c0_15 = arith.constant 0 : index
    %c0_16 = arith.constant 0 : index
    %44 = vector.load %arg12[%c0_15, %c0_16] : memref<1x512xf32, #tpu.memory_space<vmem>>, vector<1x512xf32>
    tpu.vector_store %arg12[%c0_15, %c0_16], %43 {strides = array<i32>} : memref<1x512xf32, #tpu.memory_space<vmem>>, vector<1x512xf32>,
    %c0_17 = arith.constant 0 : index
    %c0_18 = arith.constant 0 : index
    %c0_19 = arith.constant 0 : index
    %45 = vector.load %arg2[%c0_17, %c0_18, %c0_19] : memref<1x4x256xf32, #tpu.memory_space<vmem>>, vector<1x4x256xf32>
    %46 = vector.shape_cast %45 : vector<1x4x256xf32> to vector<4x256xf32>
    %c0_20 = arith.constant 0 : index
    %c128 = arith.constant 128 : index
    %47 = vector.load %arg10[%c0_20, %c128] : memref<4x512xf32, #tpu.memory_space<vmem>>, vector<4x256xf32>
    tpu.vector_store %arg10[%c0_20, %c128], %46 {strides = array<i32>} : memref<4x512xf32, #tpu.memory_space<vmem>>, vector<4x256xf32>,
    %c0_21 = arith.constant 0 : index
    %c0_22 = arith.constant 0 : index
    %48 = vector.load %arg3[%c0_21, %c0_22] : memref<4x36xf32, #tpu.memory_space<vmem>>, vector<4x36xf32>
    %c0_23 = arith.constant 0 : index
    %c0_24 = arith.constant 0 : index
    %49 = vector.load %arg10[%c0_23, %c0_24] : memref<4x512xf32, #tpu.memory_space<vmem>>, vector<4x512xf32>
    %50 = vector.extract_strided_slice %49 {offsets = [0, 111], sizes = [4, 256], strides = [1, 1]} : vector<4x512xf32> to vector<4x256xf32>
    %51 = vector.broadcast %27 : vector<1x256xf32> to vector<4x256xf32>
    %52 = arith.mulf %50, %51 : vector<4x256xf32>
    %53 = vector.extract_strided_slice %49 {offsets = [0, 112], sizes = [4, 256], strides = [1, 1]} : vector<4x512xf32> to vector<4x256xf32>
    %54 = vector.extract_strided_slice %49 {offsets = [0, 113], sizes = [4, 256], strides = [1, 1]} : vector<4x512xf32> to vector<4x256xf32>
    %55 = vector.broadcast %38 : vector<1x256xf32> to vector<4x256xf32>
    %56 = arith.mulf %54, %55 : vector<4x256xf32>
    %57 = vector.extract_strided_slice %49 {offsets = [0, 127], sizes = [4, 256], strides = [1, 1]} : vector<4x512xf32> to vector<4x256xf32>
    %58 = vector.broadcast %27 : vector<1x256xf32> to vector<4x256xf32>
    %59 = arith.mulf %57, %58 : vector<4x256xf32>
    %60 = vector.extract_strided_slice %49 {offsets = [0, 128], sizes = [4, 256], strides = [1, 1]} : vector<4x512xf32> to vector<4x256xf32>
    %61 = vector.extract_strided_slice %49 {offsets = [0, 129], sizes = [4, 256], strides = [1, 1]} : vector<4x512xf32> to vector<4x256xf32>
    %62 = vector.broadcast %38 : vector<1x256xf32> to vector<4x256xf32>
    %63 = arith.mulf %61, %62 : vector<4x256xf32>
    %64 = vector.extract_strided_slice %49 {offsets = [0, 143], sizes = [4, 256], strides = [1, 1]} : vector<4x512xf32> to vector<4x256xf32>
    %65 = vector.broadcast %27 : vector<1x256xf32> to vector<4x256xf32>
    %66 = arith.mulf %64, %65 : vector<4x256xf32>
    %67 = vector.extract_strided_slice %49 {offsets = [0, 144], sizes = [4, 256], strides = [1, 1]} : vector<4x512xf32> to vector<4x256xf32>
    %68 = vector.extract_strided_slice %49 {offsets = [0, 145], sizes = [4, 256], strides = [1, 1]} : vector<4x512xf32> to vector<4x256xf32>
    %69 = vector.broadcast %38 : vector<1x256xf32> to vector<4x256xf32>
    %70 = arith.mulf %68, %69 : vector<4x256xf32>
    %71 = tpu.concatenate %52, %53, %56, %59, %60, %63, %66, %67, %70 in 0 : vector<4x256xf32>, vector<4x256xf32>, vector<4x256xf32>, vector<4x256xf32>, vector<4x256xf32>, vector<4x256xf32>, vector<4x256xf32>, vector<4x256xf32>, vector<4x256xf32> -> vector<36x256xf32>
    %cst_25 = arith.constant dense<0.000000e+00> : vector<4x256xf32>
    %72 = tpu.matmul %48, %71, %cst_25 {dimension_numbers = #tpu.dot_dimension_numbers<[1], [0], [0], [1], [0, 0, 1, 1], [], []>} : vector<4x36xf32>, vector<36x256xf32>, vector<4x256xf32> -> vector<4x256xf32>
    %c0_26 = arith.constant 0 : index
    %c0_27 = arith.constant 0 : index
    %73 = vector.load %arg4[%c0_26, %c0_27] : memref<4x1xf32, #tpu.memory_space<vmem>>, vector<4x1xf32>
    %74 = vector.broadcast %73 : vector<4x1xf32> to vector<4x256xf32>
    %75 = arith.addf %72, %74 : vector<4x256xf32>
    %cst_28 = arith.constant 0.000000e+00 : f32
    %76 = vector.broadcast %cst_28 : f32 to vector<4x256xf32>
    %77 = arith.maximumf %75, %76 : vector<4x256xf32>
    %c0_29 = arith.constant 0 : index
    %c128_30 = arith.constant 128 : index
    %78 = vector.load %arg11[%c0_29, %c128_30] : memref<4x512xf32, #tpu.memory_space<vmem>>, vector<4x256xf32>
    tpu.vector_store %arg11[%c0_29, %c128_30], %77 {strides = array<i32>} : memref<4x512xf32, #tpu.memory_space<vmem>>, vector<4x256xf32>,
    %c0_31 = arith.constant 0 : index
    %c0_32 = arith.constant 0 : index
    %79 = vector.load %arg5[%c0_31, %c0_32] : memref<9x36xf32, #tpu.memory_space<vmem>>, vector<9x36xf32>
    %c0_33 = arith.constant 0 : index
    %c0_34 = arith.constant 0 : index
    %80 = vector.load %arg11[%c0_33, %c0_34] : memref<4x512xf32, #tpu.memory_space<vmem>>, vector<4x512xf32>
    %81 = vector.extract_strided_slice %80 {offsets = [0, 111], sizes = [4, 256], strides = [1, 1]} : vector<4x512xf32> to vector<4x256xf32>
    %82 = vector.broadcast %27 : vector<1x256xf32> to vector<4x256xf32>
    %83 = arith.mulf %81, %82 : vector<4x256xf32>
    %84 = vector.extract_strided_slice %80 {offsets = [0, 112], sizes = [4, 256], strides = [1, 1]} : vector<4x512xf32> to vector<4x256xf32>
    %85 = vector.extract_strided_slice %80 {offsets = [0, 113], sizes = [4, 256], strides = [1, 1]} : vector<4x512xf32> to vector<4x256xf32>
    %86 = vector.broadcast %38 : vector<1x256xf32> to vector<4x256xf32>
    %87 = arith.mulf %85, %86 : vector<4x256xf32>
    %88 = vector.extract_strided_slice %80 {offsets = [0, 127], sizes = [4, 256], strides = [1, 1]} : vector<4x512xf32> to vector<4x256xf32>
    %89 = vector.broadcast %27 : vector<1x256xf32> to vector<4x256xf32>
    %90 = arith.mulf %88, %89 : vector<4x256xf32>
    %91 = vector.extract_strided_slice %80 {offsets = [0, 128], sizes = [4, 256], strides = [1, 1]} : vector<4x512xf32> to vector<4x256xf32>
    %92 = vector.extract_strided_slice %80 {offsets = [0, 129], sizes = [4, 256], strides = [1, 1]} : vector<4x512xf32> to vector<4x256xf32>
    %93 = vector.broadcast %38 : vector<1x256xf32> to vector<4x256xf32>
    %94 = arith.mulf %92, %93 : vector<4x256xf32>
    %95 = vector.extract_strided_slice %80 {offsets = [0, 143], sizes = [4, 256], strides = [1, 1]} : vector<4x512xf32> to vector<4x256xf32>
    %96 = vector.broadcast %27 : vector<1x256xf32> to vector<4x256xf32>
    %97 = arith.mulf %95, %96 : vector<4x256xf32>
    %98 = vector.extract_strided_slice %80 {offsets = [0, 144], sizes = [4, 256], strides = [1, 1]} : vector<4x512xf32> to vector<4x256xf32>
    %99 = vector.extract_strided_slice %80 {offsets = [0, 145], sizes = [4, 256], strides = [1, 1]} : vector<4x512xf32> to vector<4x256xf32>
    %100 = vector.broadcast %38 : vector<1x256xf32> to vector<4x256xf32>
    %101 = arith.mulf %99, %100 : vector<4x256xf32>
    %102 = tpu.concatenate %83, %84, %87, %90, %91, %94, %97, %98, %101 in 0 : vector<4x256xf32>, vector<4x256xf32>, vector<4x256xf32>, vector<4x256xf32>, vector<4x256xf32>, vector<4x256xf32>, vector<4x256xf32>, vector<4x256xf32>, vector<4x256xf32> -> vector<36x256xf32>
    %cst_35 = arith.constant dense<0.000000e+00> : vector<9x256xf32>
    %103 = tpu.matmul %79, %102, %cst_35 {dimension_numbers = #tpu.dot_dimension_numbers<[1], [0], [0], [1], [0, 0, 1, 1], [], []>} : vector<9x36xf32>, vector<36x256xf32>, vector<9x256xf32> -> vector<9x256xf32>
    %c0_36 = arith.constant 0 : index
    %c0_37 = arith.constant 0 : index
    %104 = vector.load %arg6[%c0_36, %c0_37] : memref<9x1xf32, #tpu.memory_space<vmem>>, vector<9x1xf32>
    %105 = vector.broadcast %104 : vector<9x1xf32> to vector<9x256xf32>
    %106 = arith.addf %103, %105 : vector<9x256xf32>
    %cst_38 = arith.constant 0.000000e+00 : f32
    %107 = vector.broadcast %cst_38 : f32 to vector<9x256xf32>
    %108 = arith.maximumf %106, %107 : vector<9x256xf32>
    %c0_39 = arith.constant 0 : index
    %c0_40 = arith.constant 0 : index
    %109 = vector.load %arg7[%c0_39, %c0_40] : memref<9x9xf32, #tpu.memory_space<vmem>>, vector<9x9xf32>
    %cst_41 = arith.constant dense<0.000000e+00> : vector<9x256xf32>
    %110 = tpu.matmul %109, %108, %cst_41 {dimension_numbers = #tpu.dot_dimension_numbers<[1], [0], [0], [1], [0, 0, 1, 1], [], []>} : vector<9x9xf32>, vector<9x256xf32>, vector<9x256xf32> -> vector<9x256xf32>
    %c0_42 = arith.constant 0 : index
    %c0_43 = arith.constant 0 : index
    %111 = vector.load %arg8[%c0_42, %c0_43] : memref<9x1xf32, #tpu.memory_space<vmem>>, vector<9x1xf32>
    %112 = vector.broadcast %111 : vector<9x1xf32> to vector<9x256xf32>
    %113 = arith.addf %110, %112 : vector<9x256xf32>
    %c0_44 = arith.constant 0 : index
    %c0_45 = arith.constant 0 : index
    %c0_46 = arith.constant 0 : index
    %114 = vector.load %arg1[%c0_44, %c0_45, %c0_46] : memref<1x4x256xf32, #tpu.memory_space<vmem>>, vector<1x4x256xf32>
    %115 = vector.shape_cast %114 : vector<1x4x256xf32> to vector<4x256xf32>
    %cst_47 = arith.constant dense<0.000000e+00> : vector<256xf32>
    %116 = vector.multi_reduction <add>, %115, %cst_47 [0] : vector<4x256xf32> to vector<256xf32>
    %117 = vector.shape_cast %116 : vector<256xf32> to vector<1x256xf32>
    %c0_48 = arith.constant 0 : index
    %c128_49 = arith.constant 128 : index
    %118 = vector.load %arg12[%c0_48, %c128_49] : memref<1x512xf32, #tpu.memory_space<vmem>>, vector<1x256xf32>
    tpu.vector_store %arg12[%c0_48, %c128_49], %117 {strides = array<i32>} : memref<1x512xf32, #tpu.memory_space<vmem>>, vector<1x256xf32>,
    %c0_50 = arith.constant 0 : index
    %c0_51 = arith.constant 0 : index
    %119 = vector.load %arg12[%c0_50, %c0_51] : memref<1x512xf32, #tpu.memory_space<vmem>>, vector<1x512xf32>
    %120 = vector.extract_strided_slice %119 {offsets = [0, 111], sizes = [1, 256], strides = [1, 1]} : vector<1x512xf32> to vector<1x256xf32>
    %121 = arith.mulf %120, %27 : vector<1x256xf32>
    %122 = vector.extract_strided_slice %119 {offsets = [0, 112], sizes = [1, 256], strides = [1, 1]} : vector<1x512xf32> to vector<1x256xf32>
    %123 = vector.extract_strided_slice %119 {offsets = [0, 113], sizes = [1, 256], strides = [1, 1]} : vector<1x512xf32> to vector<1x256xf32>
    %124 = arith.mulf %123, %38 : vector<1x256xf32>
    %125 = vector.extract_strided_slice %119 {offsets = [0, 127], sizes = [1, 256], strides = [1, 1]} : vector<1x512xf32> to vector<1x256xf32>
    %126 = arith.mulf %125, %27 : vector<1x256xf32>
    %127 = vector.extract_strided_slice %119 {offsets = [0, 128], sizes = [1, 256], strides = [1, 1]} : vector<1x512xf32> to vector<1x256xf32>
    %128 = vector.extract_strided_slice %119 {offsets = [0, 129], sizes = [1, 256], strides = [1, 1]} : vector<1x512xf32> to vector<1x256xf32>
    %129 = arith.mulf %128, %38 : vector<1x256xf32>
    %130 = vector.extract_strided_slice %119 {offsets = [0, 143], sizes = [1, 256], strides = [1, 1]} : vector<1x512xf32> to vector<1x256xf32>
    %131 = arith.mulf %130, %27 : vector<1x256xf32>
    %132 = vector.extract_strided_slice %119 {offsets = [0, 144], sizes = [1, 256], strides = [1, 1]} : vector<1x512xf32> to vector<1x256xf32>
    %133 = vector.extract_strided_slice %119 {offsets = [0, 145], sizes = [1, 256], strides = [1, 1]} : vector<1x512xf32> to vector<1x256xf32>
    %134 = arith.mulf %133, %38 : vector<1x256xf32>
    %135 = tpu.concatenate %121, %122, %124, %126, %127, %129, %131, %132, %134 in 0 : vector<1x256xf32>, vector<1x256xf32>, vector<1x256xf32>, vector<1x256xf32>, vector<1x256xf32>, vector<1x256xf32>, vector<1x256xf32>, vector<1x256xf32>, vector<1x256xf32> -> vector<9x256xf32>
    %136 = arith.mulf %113, %135 : vector<9x256xf32>
    %cst_52 = arith.constant dense<0.000000e+00> : vector<256xf32>
    %137 = vector.multi_reduction <add>, %136, %cst_52 [0] : vector<9x256xf32> to vector<256xf32>
    %138 = vector.shape_cast %137 : vector<256xf32> to vector<1x256xf32>
    %c0_53 = arith.constant 0 : index
    %c0_54 = arith.constant 0 : index
    %c0_55 = arith.constant 0 : index
    %139 = vector.load %arg9[%c0_53, %c0_54, %c0_55] : memref<1x1x256xf32, #tpu.memory_space<vmem>>, vector<1x1x256xf32>
    %140 = vector.shape_cast %139 : vector<1x1x256xf32> to vector<1x256xf32>
    %141 = vector.shape_cast %138 : vector<1x256xf32> to vector<1x1x256xf32>
    tpu.vector_store %arg9[%c0_53, %c0_54, %c0_55], %141 {strides = array<i32>} : memref<1x1x256xf32, #tpu.memory_space<vmem>>, vector<1x1x256xf32>,
    return
  }
  func.func @transform_0(%arg0: i32) -> (i32, i32, i32) {
    %c0_i32 = arith.constant 0 : i32
    %c0_i32_0 = arith.constant 0 : i32
    %c0_i32_1 = arith.constant 0 : i32
    return %arg0, %c0_i32, %c0_i32_0 : i32, i32, i32
  }
  func.func @transform_1(%arg0: i32) -> (i32, i32, i32) {
    %c0_i32 = arith.constant 0 : i32
    %c0_i32_0 = arith.constant 0 : i32
    %c0_i32_1 = arith.constant 0 : i32
    return %arg0, %c0_i32, %c0_i32_0 : i32, i32, i32
  }
  func.func @transform_2(%arg0: i32) -> (i32, i32) {
    %c0_i32 = arith.constant 0 : i32
    %c0_i32_0 = arith.constant 0 : i32
    %c0_i32_1 = arith.constant 0 : i32
    return %c0_i32, %c0_i32_0 : i32, i32
  }
  func.func @transform_3(%arg0: i32) -> (i32, i32) {
    %c0_i32 = arith.constant 0 : i32
    %c0_i32_0 = arith.constant 0 : i32
    %c0_i32_1 = arith.constant 0 : i32
    return %c0_i32, %c0_i32_0 : i32, i32
  }
  func.func @transform_4(%arg0: i32) -> (i32, i32) {
    %c0_i32 = arith.constant 0 : i32
    %c0_i32_0 = arith.constant 0 : i32
    %c0_i32_1 = arith.constant 0 : i32
    return %c0_i32, %c0_i32_0 : i32, i32
  }
  func.func @transform_5(%arg0: i32) -> (i32, i32) {
    %c0_i32 = arith.constant 0 : i32
    %c0_i32_0 = arith.constant 0 : i32
    %c0_i32_1 = arith.constant 0 : i32
    return %c0_i32, %c0_i32_0 : i32, i32
  }
  func.func @transform_6(%arg0: i32) -> (i32, i32) {
    %c0_i32 = arith.constant 0 : i32
    %c0_i32_0 = arith.constant 0 : i32
    %c0_i32_1 = arith.constant 0 : i32
    return %c0_i32, %c0_i32_0 : i32, i32
  }
  func.func @transform_7(%arg0: i32) -> (i32, i32) {
    %c0_i32 = arith.constant 0 : i32
    %c0_i32_0 = arith.constant 0 : i32
    %c0_i32_1 = arith.constant 0 : i32
    return %c0_i32, %c0_i32_0 : i32, i32
  }
  func.func @transform_8(%arg0: i32) -> (i32, i32, i32) {
    %c0_i32 = arith.constant 0 : i32
    %c0_i32_0 = arith.constant 0 : i32
    %c0_i32_1 = arith.constant 0 : i32
    return %arg0, %c0_i32, %c0_i32_0 : i32, i32, i32
  }
}

</mosaic_0001>

<llo_original>
// kernel: kpn_forward.1
$region0: #{kpn_forward.1}
  #allocation0 [shape = 'u32[]', space=smem, size = 0x4, offset = 0x4, fixed_abs, tag = 'smem constant byte address 0x4 - core index']
  #allocation1 [shape = 'u32[144,128]{1,0:T(1,128)}', space=vmem, size = 0x12000, scoped, tag = 'internal scratch']
  #allocation2 [shape = 'f32[4,512]{1,0:T(4,128)}', space=vmem, size = 0x2000, scoped, tag = 'scratch operand']
  #allocation3 [shape = 'f32[4,512]{1,0:T(4,128)}', space=vmem, size = 0x2000, scoped, tag = 'scratch operand']
  #allocation4 [shape = 'f32[1,512]{1,0:T(1,128)}', space=vmem, size = 0x800, scoped, tag = 'scratch operand']
  %s0 = inlined_call_operand.vmem [shape: f32[2,4,256], index: 0, kind: input, shape index: {}]
  %s1 = inlined_call_operand.vmem [shape: f32[2,4,256], index: 1, kind: input, shape index: {}]
  %s2 = inlined_call_operand.vmem [shape: f32[4,36], index: 2, kind: input, shape index: {}]
  %s3 = inlined_call_operand.vmem [shape: f32[4,1], index: 3, kind: input, shape index: {}]
  %s4 = inlined_call_operand.vmem [shape: f32[9,36], index: 4, kind: input, shape index: {}]
  %s5 = inlined_call_operand.vmem [shape: f32[9,1], index: 5, kind: input, shape index: {}]
  %s6 = inlined_call_operand.vmem [shape: f32[9,9], index: 6, kind: input, shape index: {}]
  %s7 = inlined_call_operand.vmem [shape: f32[9,1], index: 7, kind: input, shape index: {}]
  %s8 = inlined_call_operand.vmem [shape: f32[2,1,256], index: 8, kind: output, shape index: {}]
  %s9 = sld [smem:[#allocation0]]
  $region65: #{kpn_forward.1} parent=0
    _
  %s11 = ssub.s32 1, %s9
  %s12 = scalar_select 0, %s11, %s9
  loop: start=0, step=1, limit=4
  $region2: #{kpn_forward.1} parent=0 // loop_pre_header
    _
  $region3: #{kpn_forward.1} parent=0 // loop_header
    %s14 = sphi 0, %s18
    %p15 = scmp.ge.s32.totalorder %s14, 4
    %s24 = sphi 0, %s26
    %s27 = sphi 0, %s24
    %s28 = sphi 0, %s27
    %s44 = sphi 0, %s28
    %s50 = sphi 0, %s52
    %s53 = sphi 0, %s50
    %s54 = sphi 0, %s53
    %s70 = sphi 0, %s54
    %s74 = sphi 0, %s74
    %s76 = sphi 0, %s74
    %s77 = sphi 0, %s76
    %s91 = sphi 0, %s77
    %s95 = sphi 0, %s95
    %s97 = sphi 0, %s95
    %s98 = sphi 0, %s97
    %s112 = sphi 0, %s98
    %s116 = sphi 0, %s116
    %s118 = sphi 0, %s116
    %s119 = sphi 0, %s118
    %s133 = sphi 0, %s119
    %s137 = sphi 0, %s137
    %s139 = sphi 0, %s137
    %s140 = sphi 0, %s139
    %s154 = sphi 0, %s140
    %s158 = sphi 0, %s158
    %s160 = sphi 0, %s158
    %s161 = sphi 0, %s160
    %s175 = sphi 0, %s161
    %s179 = sphi 0, %s179
    %s181 = sphi 0, %s179
    %s182 = sphi 0, %s181
    %s196 = sphi 0, %s182
    %s202 = sphi 0, %s204
    %s205 = sphi 0, %s202
    %s206 = sphi 0, %s205
    %s222 = sphi 0, %s206
  $region4: #{kpn_forward.1} parent=0 // loop_header_branch
    %17 = sbr.rel (%p15) target = $region8
  $region5: #{kpn_forward.1} parent=0 // loop_body
    %s19 = ssub.s32 %s14, 1
    %s20 = ssub.s32 %s14, 2
    %s21 = sadd.s32 %s14, 1
    %s22 = ssub.s32 %s14, %s21
    %p23 = scmp.eq.s32.totalorder %s22, 0
    %s25 = sadd.s32 %s24, 1
    %s26 = scalar_select %p23, %s24, %s25
    %p29 = pneg %p23
    %p30 = scmp.eq.s32.totalorder %s14, 1
    %p31 = por %p29, %p30
    %p32 = scmp.ne.s32.totalorder %s24, %s27
    %p33 = scmp.eq.s32.totalorder %s14, 0
    %p34 = por %p32, %p33
    %p35 = scmp.ne.s32.totalorder %s24, %s27
    %p36 = scmp.eq.s32.totalorder %s19, 1
    %p37 = por %p35, %p36
    %p38 = scmp.ne.s32.totalorder %s27, %s28
    %p39 = scmp.eq.s32.totalorder %s19, 0
    %p40 = por %p38, %p39
    %p41 = scmp.ne.s32.totalorder %s27, %s28
    %p42 = scmp.eq.s32.totalorder %s20, 1
    %p43 = por %p41, %p42
    %p45 = scmp.ne.s32.totalorder %s28, %s44
    %p46 = scmp.eq.s32.totalorder %s20, 0
    %p47 = por %p45, %p46
    %s48 = ssub.s32 %s14, %s21
    %p49 = scmp.eq.s32.totalorder %s48, 0
    %s51 = sadd.s32 %s50, 1
    %s52 = scalar_select %p49, %s50, %s51
    %p55 = pneg %p49
    %p56 = scmp.eq.s32.totalorder %s14, 1
    %p57 = por %p55, %p56
    %p58 = scmp.ne.s32.totalorder %s50, %s53
    %p59 = scmp.eq.s32.totalorder %s14, 0
    %p60 = por %p58, %p59
    %p61 = scmp.ne.s32.totalorder %s50, %s53
    %p62 = scmp.eq.s32.totalorder %s19, 1
    %p63 = por %p61, %p62
    %p64 = scmp.ne.s32.totalorder %s53, %s54
    %p65 = scmp.eq.s32.totalorder %s19, 0
    %p66 = por %p64, %p65
    %p67 = scmp.ne.s32.totalorder %s53, %s54
    %p68 = scmp.eq.s32.totalorder %s20, 1
    %p69 = por %p67, %p68
    %p71 = scmp.ne.s32.totalorder %s54, %s70
    %p72 = scmp.eq.s32.totalorder %s20, 0
    %p73 = por %p71, %p72
    %s75 = sadd.s32 %s74, 1
    %p78 = scmp.eq.s32.totalorder %s14, 1
    %p79 = scmp.ne.s32.totalorder %s74, %s76
    %p80 = scmp.eq.s32.totalorder %s14, 0
    %p81 = por %p79, %p80
    %p82 = scmp.ne.s32.totalorder %s74, %s76
    %p83 = scmp.eq.s32.totalorder %s19, 1
    %p84 = por %p82, %p83
    %p85 = scmp.ne.s32.totalorder %s76, %s77
    %p86 = scmp.eq.s32.totalorder %s19, 0
    %p87 = por %p85, %p86
    %p88 = scmp.ne.s32.totalorder %s76, %s77
    %p89 = scmp.eq.s32.totalorder %s20, 1
    %p90 = por %p88, %p89
    %p92 = scmp.ne.s32.totalorder %s77, %s91
    %p93 = scmp.eq.s32.totalorder %s20, 0
    %p94 = por %p92, %p93
    %s96 = sadd.s32 %s95, 1
    %p99 = scmp.eq.s32.totalorder %s14, 1
    %p100 = scmp.ne.s32.totalorder %s95, %s97
    %p101 = scmp.eq.s32.totalorder %s14, 0
    %p102 = por %p100, %p101
    %p103 = scmp.ne.s32.totalorder %s95, %s97
    %p104 = scmp.eq.s32.totalorder %s19, 1
    %p105 = por %p103, %p104
    %p106 = scmp.ne.s32.totalorder %s97, %s98
    %p107 = scmp.eq.s32.totalorder %s19, 0
    %p108 = por %p106, %p107
    %p109 = scmp.ne.s32.totalorder %s97, %s98
    %p110 = scmp.eq.s32.totalorder %s20, 1
    %p111 = por %p109, %p110
    %p113 = scmp.ne.s32.totalorder %s98, %s112
    %p114 = scmp.eq.s32.totalorder %s20, 0
    %p115 = por %p113, %p114
    %s117 = sadd.s32 %s116, 1
    %p120 = scmp.eq.s32.totalorder %s14, 1
    %p121 = scmp.ne.s32.totalorder %s116, %s118
    %p122 = scmp.eq.s32.totalorder %s14, 0
    %p123 = por %p121, %p122
    %p124 = scmp.ne.s32.totalorder %s116, %s118
    %p125 = scmp.eq.s32.totalorder %s19, 1
    %p126 = por %p124, %p125
    %p127 = scmp.ne.s32.totalorder %s118, %s119
    %p128 = scmp.eq.s32.totalorder %s19, 0
    %p129 = por %p127, %p128
    %p130 = scmp.ne.s32.totalorder %s118, %s119
    %p131 = scmp.eq.s32.totalorder %s20, 1
    %p132 = por %p130, %p131
    %p134 = scmp.ne.s32.totalorder %s119, %s133
    %p135 = scmp.eq.s32.totalorder %s20, 0
    %p136 = por %p134, %p135
    %s138 = sadd.s32 %s137, 1
    %p141 = scmp.eq.s32.totalorder %s14, 1
    %p142 = scmp.ne.s32.totalorder %s137, %s139
    %p143 = scmp.eq.s32.totalorder %s14, 0
    %p144 = por %p142, %p143
    %p145 = scmp.ne.s32.totalorder %s137, %s139
    %p146 = scmp.eq.s32.totalorder %s19, 1
    %p147 = por %p145, %p146
    %p148 = scmp.ne.s32.totalorder %s139, %s140
    %p149 = scmp.eq.s32.totalorder %s19, 0
    %p150 = por %p148, %p149
    %p151 = scmp.ne.s32.totalorder %s139, %s140
    %p152 = scmp.eq.s32.totalorder %s20, 1
    %p153 = por %p151, %p152
    %p155 = scmp.ne.s32.totalorder %s140, %s154
    %p156 = scmp.eq.s32.totalorder %s20, 0
    %p157 = por %p155, %p156
    %s159 = sadd.s32 %s158, 1
    %p162 = scmp.eq.s32.totalorder %s14, 1
    %p163 = scmp.ne.s32.totalorder %s158, %s160
    %p164 = scmp.eq.s32.totalorder %s14, 0
    %p165 = por %p163, %p164
    %p166 = scmp.ne.s32.totalorder %s158, %s160
    %p167 = scmp.eq.s32.totalorder %s19, 1
    %p168 = por %p166, %p167
    %p169 = scmp.ne.s32.totalorder %s160, %s161
    %p170 = scmp.eq.s32.totalorder %s19, 0
    %p171 = por %p169, %p170
    %p172 = scmp.ne.s32.totalorder %s160, %s161
    %p173 = scmp.eq.s32.totalorder %s20, 1
    %p174 = por %p172, %p173
    %p176 = scmp.ne.s32.totalorder %s161, %s175
    %p177 = scmp.eq.s32.totalorder %s20, 0
    %p178 = por %p176, %p177
    %s180 = sadd.s32 %s179, 1
    %p183 = scmp.eq.s32.totalorder %s14, 1
    %p184 = scmp.ne.s32.totalorder %s179, %s181
    %p185 = scmp.eq.s32.totalorder %s14, 0
    %p186 = por %p184, %p185
    %p187 = scmp.ne.s32.totalorder %s179, %s181
    %p188 = scmp.eq.s32.totalorder %s19, 1
    %p189 = por %p187, %p188
    %p190 = scmp.ne.s32.totalorder %s181, %s182
    %p191 = scmp.eq.s32.totalorder %s19, 0
    %p192 = por %p190, %p191
    %p193 = scmp.ne.s32.totalorder %s181, %s182
    %p194 = scmp.eq.s32.totalorder %s20, 1
    %p195 = por %p193, %p194
    %p197 = scmp.ne.s32.totalorder %s182, %s196
    %p198 = scmp.eq.s32.totalorder %s20, 0
    %p199 = por %p197, %p198
    %s200 = ssub.s32 %s14, %s21
    %p201 = scmp.eq.s32.totalorder %s200, 0
    %s203 = sadd.s32 %s202, 1
    %s204 = scalar_select %p201, %s202, %s203
    %p207 = pneg %p201
    %p208 = scmp.eq.s32.totalorder %s14, 1
    %p209 = por %p207, %p208
    %p210 = scmp.ne.s32.totalorder %s202, %s205
    %p211 = scmp.eq.s32.totalorder %s14, 0
    %p212 = por %p210, %p211
    %p213 = scmp.ne.s32.totalorder %s202, %s205
    %p214 = scmp.eq.s32.totalorder %s19, 1
    %p215 = por %p213, %p214
    %p216 = scmp.ne.s32.totalorder %s205, %s206
    %p217 = scmp.eq.s32.totalorder %s19, 0
    %p218 = por %p216, %p217
    %p219 = scmp.ne.s32.totalorder %s205, %s206
    %p220 = scmp.eq.s32.totalorder %s20, 1
    %p221 = por %p219, %p220
    %p223 = scmp.ne.s32.totalorder %s206, %s222
    %p224 = scmp.eq.s32.totalorder %s20, 0
    %p225 = por %p223, %p224
    %p226 = scmp.le.s32.totalorder 1, %s14
    %p227 = scmp.lt.s32.totalorder %s14, 3
    %p228 = pnand %p226, %p227
    %p229 = pneg %p228
    // Predicated region
    $region9: #{kpn_forward.1} parent=5 // pred_check
      _
    $region10: #{kpn_forward.1} parent=5 // pred_check_branch
      %231 = sbr.rel (%p228) target = $region12
    $region11: #{kpn_forward.1} parent=5 // pred_region
      %s232 = ssub.s32 %s14, 1
      // Predicated region
      $region13: #{kpn_forward.1} parent=11 // pred_check
        %p233 = pneg %p87
      $region14: #{kpn_forward.1} parent=11 // pred_check_branch
        %235 = sbr.rel (%p233) target = $region16
      $region15: #{kpn_forward.1} parent=11 // pred_region
        _
      $region16: #{kpn_forward.1} parent=11 // pred_fallthru
        _
      // Predicated region
      $region17: #{kpn_forward.1} parent=11 // pred_check
        %p236 = pneg %p108
      $region18: #{kpn_forward.1} parent=11 // pred_check_branch
        %238 = sbr.rel (%p236) target = $region20
      $region19: #{kpn_forward.1} parent=11 // pred_region
        _
      $region20: #{kpn_forward.1} parent=11 // pred_fallthru
        _
      // Predicated region
      $region21: #{kpn_forward.1} parent=11 // pred_check
        %p239 = pneg %p129
      $region22: #{kpn_forward.1} parent=11 // pred_check_branch
        %241 = sbr.rel (%p239) target = $region24
      $region23: #{kpn_forward.1} parent=11 // pred_region
        _
      $region24: #{kpn_forward.1} parent=11 // pred_fallthru
        _
      // Predicated region
      $region25: #{kpn_forward.1} parent=11 // pred_check
        %p242 = pneg %p150
      $region26: #{kpn_forward.1} parent=11 // pred_check_branch
        %244 = sbr.rel (%p242) target = $region28
      $region27: #{kpn_forward.1} parent=11 // pred_region
        _
      $region28: #{kpn_forward.1} parent=11 // pred_fallthru
        _
      // Predicated region
      $region29: #{kpn_forward.1} parent=11 // pred_check
        %p245 = pneg %p171
      $region30: #{kpn_forward.1} parent=11 // pred_check_branch
        %247 = sbr.rel (%p245) target = $region32
      $region31: #{kpn_forward.1} parent=11 // pred_region
        _
      $region32: #{kpn_forward.1} parent=11 // pred_fallthru
        _
      // Predicated region
      $region33: #{kpn_forward.1} parent=11 // pred_check
        %p248 = pneg %p192
      $region34: #{kpn_forward.1} parent=11 // pred_check_branch
        %250 = sbr.rel (%p248) target = $region36
      $region35: #{kpn_forward.1} parent=11 // pred_region
        _
      $region36: #{kpn_forward.1} parent=11 // pred_fallthru
        _
    $region12: #{kpn_forward.1} parent=5 // pred_fallthru
      _
    %p251 = scmp.lt.s32.totalorder %s14, 2
    // Predicated region
    $region37: #{kpn_forward.1} parent=5 // pred_check
      %p252 = pneg %p251
    $region38: #{kpn_forward.1} parent=5 // pred_check_branch
      %254 = sbr.rel (%p252) target = $region40
    $region39: #{kpn_forward.1} parent=5 // pred_region
      // Predicated region
      $region41: #{kpn_forward.1} parent=39 // pred_check
        %p255 = pneg %p34
      $region42: #{kpn_forward.1} parent=39 // pred_check_branch
        %257 = sbr.rel (%p255) target = $region44
      $region43: #{kpn_forward.1} parent=39 // pred_region
        %p258 = scmp.lt.s32.totalorder %s14, 1
        %s259 = scalar_select %p258, %s14, 1
        %s260 = smul.addr %s259, 2
        %s261 = smul.addr %s260, 4
        %s262 = scalar_lea.vmem %s0, %s261
      $region44: #{kpn_forward.1} parent=39 // pred_fallthru
        _
      // Predicated region
      $region45: #{kpn_forward.1} parent=39 // pred_check
        %p263 = pneg %p60
      $region46: #{kpn_forward.1} parent=39 // pred_check_branch
        %265 = sbr.rel (%p263) target = $region48
      $region47: #{kpn_forward.1} parent=39 // pred_region
        %p266 = scmp.lt.s32.totalorder %s14, 1
        %s267 = scalar_select %p266, %s14, 1
        %s268 = smul.addr %s267, 2
        %s269 = smul.addr %s268, 4
        %s270 = scalar_lea.vmem %s1, %s269
      $region48: #{kpn_forward.1} parent=39 // pred_fallthru
        _
    $region40: #{kpn_forward.1} parent=5 // pred_fallthru
      _
    %p271 = scmp.le.s32.totalorder 1, %s14
    %p272 = scmp.lt.s32.totalorder %s14, 3
    %p273 = pnand %p271, %p272
    %p274 = pneg %p273
    // Predicated region
    $region49: #{kpn_forward.1} parent=5 // pred_check
      _
    $region50: #{kpn_forward.1} parent=5 // pred_check_branch
      %276 = sbr.rel (%p273) target = $region52
    $region51: #{kpn_forward.1} parent=5 // pred_region
      %s277 = ssub.s32 %s14, 1
      %p278 = scmp.lt.s32.totalorder %s19, 1
      %s279 = scalar_select %p278, %s19, 1
      %s280 = smul.addr %s279, 2
      %s281 = smul.addr %s280, 4
      %s282 = scalar_lea.vmem %s0, %s281
      %p283 = pneg %p40
      %p284 = pneg %p37
      %p285 = scmp.lt.s32.totalorder %s19, 1
      %s286 = scalar_select %p285, %s19, 1
      %s287 = smul.addr %s286, 2
      %s288 = smul.addr %s287, 4
      %s289 = scalar_lea.vmem %s1, %s288
      %p290 = pneg %p66
      %p291 = pneg %p63
      %p292 = pneg %p87
      %p293 = pneg %p84
      %p294 = pneg %p108
      %p295 = pneg %p105
      %p296 = pneg %p129
      %p297 = pneg %p126
      %p298 = pneg %p150
      %p299 = pneg %p147
      %p300 = pneg %p171
      %p301 = pneg %p168
      %p302 = pneg %p192
      %p303 = pneg %p189
      %p304 = pneg %p218
      %p305 = pneg %p215
      %p306 = scmp.lt.s32.totalorder %s19, 1
      %s307 = scalar_select %p306, %s19, 1
      %s308 = smul.addr %s307, 2
      %s309 = scalar_lea.vmem %s8, %s308
      %p310 = scmp.lt.s32.totalorder %s19, 1
      %s311 = scalar_select %p310, %s19, 1
      %s312 = smul.addr %s311, 2
      %s313 = smul.addr %s312, 4
      %s314 = scalar_lea.vmem %s0, %s313
      %p315 = scmp.lt.s32.totalorder %s19, 1
      %s316 = scalar_select %p315, %s19, 1
      %s317 = smul.addr %s316, 2
      %s318 = smul.addr %s317, 4
      %s319 = scalar_lea.vmem %s1, %s318
      %p320 = scmp.lt.s32.totalorder %s19, 1
      %s321 = scalar_select %p320, %s19, 1
      %s322 = smul.addr %s321, 2
      %s323 = scalar_lea.vmem %s8, %s322
      %v324 = vlaneseq
      %v325 = vand.u32 %v324, 127
      %v326 = vadd.s32 %v325, 128
      %vm327 = vcmp.lt.s32.totalorder %v325, 0
      %v328 = vsub.s32 0, %v325
      %v329 = vsel %vm327, %v328, %v325
      %v330 = vshrl.u32 %v329, 4
      %v331 = vand.u32 %v329, 15
      %v332 = vsub.s32 0, %v331
      %v333 = vsel %vm327, %v332, %v331
      %vm334 = vcmp.lt.s32.totalorder %v326, 0
      %v335 = vsub.s32 0, %v326
      %v336 = vsel %vm334, %v335, %v326
      %v337 = vshrl.u32 %v336, 4
      %v338 = vand.u32 %v336, 15
      %v339 = vsub.s32 0, %v338
      %v340 = vsel %vm334, %v339, %v338
      %vm341 = vcmp.ne.s32.totalorder %v333, 0
      %vm342 = vcmp.ne.s32.totalorder %v340, 0
      %vm343 = vcmp.lt.s32.totalorder %v333, 0
      %vm344 = vcmp.lt.s32.totalorder %v340, 0
      %vm345 = vmand %vm343, %vm341
      %vm346 = vmand %vm344, %vm342
      %v347 = vadd.s32 %v333, 16
      %v348 = vadd.s32 %v340, 16
      %v349 = vsel %vm345, %v347, %v333
      %v350 = vsel %vm346, %v348, %v340
      %v351 = vadd.s32 %v349, 4294967295
      %v352 = vadd.s32 %v350, 4294967295
      %vm353 = vcmp.ge.s32.totalorder %v351, 0
      %vm354 = vcmp.ge.s32.totalorder %v352, 0
      %vm355 = vcmp.lt.s32.totalorder %v351, 16
      %vm356 = vcmp.lt.s32.totalorder %v352, 16
      %vm357 = vmand %vm353, %vm355
      %vm358 = vmand %vm354, %vm356
      %v359 = vsel %vm357, 1, 0
      %v360 = vsel %vm358, 1, 0
      %v361 = vcvt.s32.f32 %v359
      %v362 = vcvt.s32.f32 %v360
      %v363 = vadd.s32 %v349, 1
      %v364 = vadd.s32 %v350, 1
      %vm365 = vcmp.ge.s32.totalorder %v363, 0
      %vm366 = vcmp.ge.s32.totalorder %v364, 0
      %vm367 = vcmp.lt.s32.totalorder %v363, 16
      %vm368 = vcmp.lt.s32.totalorder %v364, 16
      %vm369 = vmand %vm365, %vm367
      %vm370 = vmand %vm366, %vm368
      %v371 = vsel %vm369, 1, 0
      %v372 = vsel %vm370, 1, 0
      %v373 = vcvt.s32.f32 %v371
      %v374 = vcvt.s32.f32 %v372
      %375 = vst [vmem:[#allocation2] sm:$0xff] 0.0
      %376 = vst [vmem:[#allocation2 + $0x8] sm:$0xff] 0.0
      %377 = vst [vmem:[#allocation3] sm:$0xff] 0.0
      %378 = vst [vmem:[#allocation3 + $0x8] sm:$0xff] 0.0
      %v379 = vlaneseq
      %vm380 = vcmp.ge.s32.totalorder %v379, 0
      %vm381 = vcmp.lt.s32.totalorder %v379, 512
      %vm382 = vmand %vm380, %vm381
      %383 = vst.msk [vmem:[#allocation4] sm:$0xf] %vm382, 0.0
      %v384 = vld [vmem:[%s319] sm:$0xff]
      %385 = vst [vmem:[#allocation2 + $0x4] sm:$0xff] %v384
      %v386 = vld [vmem:[%s2] sm:$0xf]
      %v387 = vld [vmem:[#allocation2] sm:$0xff]
      %v388 = vld [vmem:[#allocation2 + $0x8] sm:$0xff]
      %v391 = vcombine.low %v361, %v362
      %392 = vrot.lane.b32.xlu0 %v391, 111
      %v393 = vpop.permute.xlu0 %392
      %v394 = vrot.slane %v393, 4
      %vm395 = vcmask 908288
      %v396 = vsel %vm395, %v394, %v393
      %v399 = vmul.f32 %v387, %v396
      %v400 = vmul.f32 %v388, %v394
      %v403 = vcombine.low %v373, %v374
      %404 = vrot.lane.b32.xlu0 %v403, 113
      %v405 = vpop.permute.xlu0 %404
      %v406 = vrot.slane %v405, 4
      %vm407 = vcmask 924672
      %v408 = vsel %vm407, %v406, %v405
      %v411 = vmul.f32 %v387, %v408
      %v412 = vmul.f32 %v388, %v406
      %413 = vrot.lane.b32.xlu0 %v391, 127
      %v414 = vpop.permute.xlu0 %413
      %v415 = vrot.slane %v414, 4
      %vm416 = vcmask 1039360
      %v417 = vsel %vm416, %v415, %v414
      %v420 = vmul.f32 %v387, %v417
      %v421 = vmul.f32 %v388, %v415
      %424 = vrot.lane.b32.xlu0 %v387, 127
      %v425 = vpop.permute.xlu0 %424
      %426 = vrot.lane.b32.xlu0 %v388, 127
      %v427 = vpop.permute.xlu0 %426
      %v428 = vrot.slane %v425, 4
      %v429 = vrot.slane %v427, 4
      %vm430 = vcmask 1043456
      %v431 = vsel %vm430, %v428, %v429
      %v432 = vsel %vm416, %v431, %v427
      %v435 = vmul.f32 %v432, %v403
      %436 = vrot.lane.b32.xlu0 %v387, 113
      %v437 = vpop.permute.xlu0 %436
      %438 = vrot.lane.b32.xlu0 %v388, 113
      %v439 = vpop.permute.xlu0 %438
      %v440 = vrot.slane %v437, 4
      %v441 = vrot.slane %v439, 4
      %v442 = vsel %vm430, %v440, %v441
      %v443 = vsel %vm407, %v442, %v439
      %v446 = vmul.f32 %v443, %v391
      %447 = vrot.lane.b32.xlu0 %v387, 111
      %v448 = vpop.permute.xlu0 %447
      %449 = vrot.lane.b32.xlu0 %v388, 111
      %v450 = vpop.permute.xlu0 %449
      %v451 = vrot.slane %v448, 4
      %v452 = vrot.slane %v450, 4
      %v453 = vsel %vm430, %v451, %v452
      %v454 = vsel %vm395, %v453, %v450
      %v456 = vmul.f32 %v454, %v403
      %v458 = vcombine.high %v399, %v399
      %v460 = vcombine.low %v387, %v387
      %v461 = vcombine.low %v388, %v388
      %462 = vrot.lane.b32.xlu0 %v460, 127
      %v463 = vpop.permute.xlu0 %462
      %464 = vrot.lane.b32.xlu0 %v461, 127
      %v465 = vpop.permute.xlu0 %464
      %v466 = vsel %vm416, %v463, %v425
      %v467 = vsel %vm416, %v425, %v465
      %v473 = vcombine.high %v411, %v411
      %474 = vrot.lane.b32.xlu0 %v411, 126
      %v475 = vpop.permute.xlu0 %474
      %476 = vrot.lane.b32.xlu0 %v473, 126
      %v477 = vpop.permute.xlu0 %476
      %478 = vrot.lane.b32.xlu0 %v412, 126
      %v479 = vpop.permute.xlu0 %478
      %vm480 = vcmask 1031168
      %v481 = vsel %vm480, %v475, %v477
      %v482 = vsel %vm480, %v477, %v479
      %v488 = vcombine.low %v420, %v420
      %v489 = vcombine.low %v421, %v421
      %490 = vrot.lane.b32.xlu0 %v488, 112
      %v491 = vpop.permute.xlu0 %490
      %492 = vrot.lane.b32.xlu0 %v420, 112
      %v493 = vpop.permute.xlu0 %492
      %494 = vrot.lane.b32.xlu0 %v489, 112
      %v495 = vpop.permute.xlu0 %494
      %vm496 = vcmask 916480
      %v497 = vsel %vm496, %v491, %v493
      %v498 = vsel %vm496, %v493, %v495
      %v502 = vcombine.high %v387, %v387
      %503 = vrot.lane.b32.xlu0 %v502, 111
      %v504 = vpop.permute.xlu0 %503
      %v505 = vsel %vm395, %v504, %v450
      %v510 = vcombine.low %v435, %v435
      %511 = vrot.lane.b32.xlu0 %v510, 111
      %v512 = vpop.permute.xlu0 %511
      %513 = vrot.lane.b32.xlu0 %v435, 111
      %v514 = vpop.permute.xlu0 %513
      %v515 = vsel %vm395, %v512, %v514
      %v520 = vcombine.high %v446, %v446
      %521 = vrot.lane.b32.xlu0 %v446, 111
      %v522 = vpop.permute.xlu0 %521
      %523 = vrot.lane.b32.xlu0 %v520, 111
      %v524 = vpop.permute.xlu0 %523
      %v525 = vsel %vm395, %v522, %v524
      %529 = vrot.lane.b32.xlu0 %v387, 95
      %v530 = vpop.permute.xlu0 %529
      %531 = vrot.lane.b32.xlu0 %v461, 95
      %v532 = vpop.permute.xlu0 %531
      %533 = vrot.lane.b32.xlu0 %v388, 95
      %v534 = vpop.permute.xlu0 %533
      %vm535 = vcmask 777216
      %v536 = vsel %vm535, %v530, %v532
      %v537 = vsel %vm535, %v532, %v534
      %v542 = vcombine.high %v456, %v456
      %543 = vrot.lane.b32.xlu0 %v456, 111
      %v544 = vpop.permute.xlu0 %543
      %545 = vrot.lane.b32.xlu0 %v542, 111
      %v546 = vpop.permute.xlu0 %545
      %v547 = vsel %vm395, %v544, %v546
      %v548 = vsel %vm430, %v399, %v466
      %v549 = vsel %vm430, %v458, %v467
      %v550 = vsel %vm430, %v400, %v465
      %v551 = vsel %vm430, %v481, %v497
      %v552 = vsel %vm430, %v482, %v498
      %v553 = vsel %vm430, %v479, %v495
      %v554 = vsel %vm430, %v504, %v512
      %v555 = vsel %vm430, %v505, %v515
      %v556 = vsel %vm430, %v450, %v514
      %v557 = vsel %vm430, %v522, %v530
      %v558 = vsel %vm430, %v525, %v536
      %v559 = vsel %vm430, %v524, %v537
      %v560 = vld [vmem:[%s3] sm:$0xf]
      %562 = vset.pattern.permute.xlu0 0
      %563 = vperm.xlu0 %562, %v560
      %v564 = vpop.permute.xlu0 %563
      %578 = vrot.lane.b32.xlu0 %v548, 17
      %v579 = vpop.permute.xlu0 %578
      %580 = vrot.lane.b32.xlu0 %v549, 17
      %v581 = vpop.permute.xlu0 %580
      %582 = vrot.lane.b32.xlu0 %v550, 17
      %v583 = vpop.permute.xlu0 %582
      %584 = vrot.lane.b32.xlu0 %v551, 17
      %v585 = vpop.permute.xlu0 %584
      %586 = vrot.lane.b32.xlu0 %v552, 17
      %v587 = vpop.permute.xlu0 %586
      %588 = vrot.lane.b32.xlu0 %v553, 17
      %v589 = vpop.permute.xlu0 %588
      %590 = vrot.lane.b32.xlu0 %v554, 17
      %v591 = vpop.permute.xlu0 %590
      %592 = vrot.lane.b32.xlu0 %v555, 17
      %v593 = vpop.permute.xlu0 %592
      %594 = vrot.lane.b32.xlu0 %v556, 17
      %v595 = vpop.permute.xlu0 %594
      %596 = vrot.lane.b32.xlu0 %v557, 17
      %v597 = vpop.permute.xlu0 %596
      %598 = vrot.lane.b32.xlu0 %v558, 17
      %v599 = vpop.permute.xlu0 %598
      %600 = vrot.lane.b32.xlu0 %v559, 17
      %v601 = vpop.permute.xlu0 %600
      %602 = vrot.lane.b32.xlu0 %v544, 17
      %v603 = vpop.permute.xlu0 %602
      %604 = vrot.lane.b32.xlu0 %v547, 17
      %v605 = vpop.permute.xlu0 %604
      %606 = vrot.lane.b32.xlu0 %v546, 17
      %v607 = vpop.permute.xlu0 %606
      %vm608 = vcmask 138240
      %v609 = vsel %vm608, %v579, %v581
      %v610 = vsel %vm608, %v581, %v583
      %v611 = vsel %vm608, %v585, %v587
      %v612 = vsel %vm608, %v587, %v589
      %v613 = vsel %vm608, %v591, %v593
      %v614 = vsel %vm608, %v593, %v595
      %v615 = vsel %vm608, %v597, %v599
      %v616 = vsel %vm608, %v599, %v601
      %v617 = vsel %vm608, %v603, %v605
      %v618 = vsel %vm608, %v605, %v607
      %vm627 = vcmask 293888
      %v629 = vsel %vm627, %v386, 0
      %v631 = vsel %vm430, %v617, 0
      %v633 = vsel %vm430, %v618, 0
      %635 = vmatprep.subr.mxu0 %v610
      %636 = vmatpush1.msra.mxu0 %v609
      %637 = vmatprep.subr.mxu0 %v612
      %638 = vmatpush1.msra.mxu0 %v611
      %639 = vmatprep.subr.mxu0 %v614
      %640 = vmatpush1.msra.mxu0 %v613
      %641 = vmatprep.subr.mxu0 %v616
      %642 = vmatpush1.msra.mxu0 %v615
      %643 = vmatprep.subr.mxu0 %v633
      %644 = vmatpush1.msra.mxu0 %v631
      %645 = vmatprep.subr.mxu0 0.0
      %646 = vmatpush1.msra.mxu0 0.0
      %647 = vmatprep.subr.mxu0 0.0
      %648 = vmatpush1.msra.mxu0 0.0
      %649 = vmatprep.subr.mxu0 0.0
      %650 = vmatpush1.msra.mxu0 0.0
      %651 = vmatprep.subr.mxu0 0.0
      %652 = vmatpush1.msra.mxu0 0.0
      %653 = vmatprep.subr.mxu0 0.0
      %654 = vmatpush1.msra.mxu0 0.0
      %655 = vmatprep.subr.mxu0 0.0
      %656 = vmatpush1.msra.mxu0 0.0
      %657 = vmatprep.subr.mxu0 0.0
      %658 = vmatpush1.msra.mxu0 0.0
      %659 = vmatprep.subr.mxu0 0.0
      %660 = vmatpush1.msra.mxu0 0.0
      %661 = vmatprep.subr.mxu0 0.0
      %662 = vmatpush1.msra.mxu0 0.0
      %663 = vmatprep.subr.mxu0 0.0
      %664 = vmatpush1.msra.mxu0 0.0
      %665 = vmatprep.subr.mxu0 0.0
      %666 = vmatpush1.msra.mxu0 0.0
      %667 = vmatprep.subr.mxu0 0.0
      %668 = vmatpush1.msra.mxu0 0.0
      %669 = vmatprep.subr.mxu0 0.0
      %670 = vmatpush1.msra.mxu0 0.0
      %671 = vmatprep.subr.mxu0 0.0
      %672 = vmatpush1.msra.mxu0 0.0
      %673 = vmatprep.subr.mxu0 0.0
      %674 = vmatpush1.msra.mxu0 0.0
      %675 = vmatprep.subr.mxu0 0.0
      %676 = vmatpush1.msra.mxu0 0.0
      %677 = vmatprep.subr.mxu0 0.0
      %678 = vmatpush1.msra.mxu0 0.0
      %679 = vmatprep.subr.mxu0 0.0
      %680 = vmatpush1.msra.mxu0 0.0
      %681 = vmatprep.subr.mxu0 0.0
      %682 = vmatpush1.msra.mxu0 0.0
      %683 = vmatprep.subr.mxu0 0.0
      %684 = vmatpush1.msra.mxu0 0.0
      %685 = vmatprep.subr.mxu0 0.0
      %686 = vmatpush1.msra.mxu0 0.0
      %687 = vmatprep.subr.mxu0 0.0
      %688 = vmatpush1.msra.mxu0 0.0
      %689 = vmatprep.subr.mxu0 0.0
      %690 = vmatpush1.msra.mxu0 0.0
      %691 = vmatprep.subr.mxu0 0.0
      %692 = vmatpush1.msra.mxu0 0.0
      %693 = vmatprep.subr.mxu0 0.0
      %694 = vmatpush1.msra.mxu0 0.0
      %695 = vmatprep.subr.mxu0 0.0
      %696 = vmatpush1.msra.mxu0 0.0
      %697 = vmatprep.subr.mxu0 0.0
      %698 = vmatpush1.msra.mxu0 0.0
      %699 = vmatprep.mubr.f32.mxu0 0.0
      %700 = vmatmul.mubr.f32.gmra.mrb[0].mxu0 %v629
      %v701 = vpop.f32.mrb[0].mxu0
      %v702 = vadd.f32 %v564, %v701
      %v703 = vpop.f32.mrb[0].mxu0
      %v704 = vadd.f32 %v564, %v703
      %705 = vdwg.mxu0
      %v706 = vmax.f32 %v702, 0.0
      %v707 = vmax.f32 %v704, 0.0
      %v710 = vcombine.low %v706, %v707
      %712 = vst [vmem:[#allocation3 + $0x4] sm:$0xff] %v710
      %v713 = vld [vmem:[%s4] sm:$0xff]
      %v714 = vld [vmem:[%s4 + $0x8] sm:$0x1]
      %v715 = vld [vmem:[#allocation3] sm:$0xff]
      %v716 = vld [vmem:[#allocation3 + $0x8] sm:$0xff]
      %v717 = vmul.f32 %v715, %v396
      %v718 = vmul.f32 %v716, %v394
      %v719 = vmul.f32 %v715, %v408
      %v720 = vmul.f32 %v716, %v406
      %v721 = vmul.f32 %v715, %v417
      %v722 = vmul.f32 %v716, %v415
      %725 = vrot.lane.b32.xlu0 %v715, 127
      %v726 = vpop.permute.xlu0 %725
      %727 = vrot.lane.b32.xlu0 %v716, 127
      %v728 = vpop.permute.xlu0 %727
      %v729 = vrot.slane %v726, 4
      %v730 = vrot.slane %v728, 4
      %v731 = vsel %vm430, %v729, %v730
      %v732 = vsel %vm416, %v731, %v728
      %v734 = vmul.f32 %v732, %v403
      %735 = vrot.lane.b32.xlu0 %v715, 113
      %v736 = vpop.permute.xlu0 %735
      %737 = vrot.lane.b32.xlu0 %v716, 113
      %v738 = vpop.permute.xlu0 %737
      %v739 = vrot.slane %v736, 4
      %v740 = vrot.slane %v738, 4
      %v741 = vsel %vm430, %v739, %v740
      %v742 = vsel %vm407, %v741, %v738
      %v744 = vmul.f32 %v742, %v391
      %745 = vrot.lane.b32.xlu0 %v715, 111
      %v746 = vpop.permute.xlu0 %745
      %747 = vrot.lane.b32.xlu0 %v716, 111
      %v748 = vpop.permute.xlu0 %747
      %v749 = vrot.slane %v746, 4
      %v750 = vrot.slane %v748, 4
      %v751 = vsel %vm430, %v749, %v750
      %v752 = vsel %vm395, %v751, %v748
      %v754 = vmul.f32 %v752, %v403
      %v756 = vcombine.high %v717, %v717
      %v758 = vcombine.low %v715, %v715
      %v759 = vcombine.low %v716, %v716
      %760 = vrot.lane.b32.xlu0 %v758, 127
      %v761 = vpop.permute.xlu0 %760
      %762 = vrot.lane.b32.xlu0 %v759, 127
      %v763 = vpop.permute.xlu0 %762
      %v764 = vsel %vm416, %v761, %v726
      %v765 = vsel %vm416, %v726, %v763
      %v771 = vcombine.high %v719, %v719
      %772 = vrot.lane.b32.xlu0 %v719, 126
      %v773 = vpop.permute.xlu0 %772
      %774 = vrot.lane.b32.xlu0 %v771, 126
      %v775 = vpop.permute.xlu0 %774
      %776 = vrot.lane.b32.xlu0 %v720, 126
      %v777 = vpop.permute.xlu0 %776
      %v778 = vsel %vm480, %v773, %v775
      %v779 = vsel %vm480, %v775, %v777
      %v785 = vcombine.low %v721, %v721
      %v786 = vcombine.low %v722, %v722
      %787 = vrot.lane.b32.xlu0 %v785, 112
      %v788 = vpop.permute.xlu0 %787
      %789 = vrot.lane.b32.xlu0 %v721, 112
      %v790 = vpop.permute.xlu0 %789
      %791 = vrot.lane.b32.xlu0 %v786, 112
      %v792 = vpop.permute.xlu0 %791
      %v793 = vsel %vm496, %v788, %v790
      %v794 = vsel %vm496, %v790, %v792
      %v798 = vcombine.high %v715, %v715
      %799 = vrot.lane.b32.xlu0 %v798, 111
      %v800 = vpop.permute.xlu0 %799
      %v801 = vsel %vm395, %v800, %v748
      %v806 = vcombine.low %v734, %v734
      %807 = vrot.lane.b32.xlu0 %v806, 111
      %v808 = vpop.permute.xlu0 %807
      %809 = vrot.lane.b32.xlu0 %v734, 111
      %v810 = vpop.permute.xlu0 %809
      %v811 = vsel %vm395, %v808, %v810
      %v816 = vcombine.high %v744, %v744
      %817 = vrot.lane.b32.xlu0 %v744, 111
      %v818 = vpop.permute.xlu0 %817
      %819 = vrot.lane.b32.xlu0 %v816, 111
      %v820 = vpop.permute.xlu0 %819
      %v821 = vsel %vm395, %v818, %v820
      %825 = vrot.lane.b32.xlu0 %v715, 95
      %v826 = vpop.permute.xlu0 %825
      %827 = vrot.lane.b32.xlu0 %v759, 95
      %v828 = vpop.permute.xlu0 %827
      %829 = vrot.lane.b32.xlu0 %v716, 95
      %v830 = vpop.permute.xlu0 %829
      %v831 = vsel %vm535, %v826, %v828
      %v832 = vsel %vm535, %v828, %v830
      %v837 = vcombine.high %v754, %v754
      %838 = vrot.lane.b32.xlu0 %v754, 111
      %v839 = vpop.permute.xlu0 %838
      %840 = vrot.lane.b32.xlu0 %v837, 111
      %v841 = vpop.permute.xlu0 %840
      %v842 = vsel %vm395, %v839, %v841
      %v843 = vsel %vm430, %v717, %v764
      %v844 = vsel %vm430, %v756, %v765
      %v845 = vsel %vm430, %v718, %v763
      %v846 = vsel %vm430, %v778, %v793
      %v847 = vsel %vm430, %v779, %v794
      %v848 = vsel %vm430, %v777, %v792
      %v849 = vsel %vm430, %v800, %v808
      %v850 = vsel %vm430, %v801, %v811
      %v851 = vsel %vm430, %v748, %v810
      %v852 = vsel %vm430, %v818, %v826
      %v853 = vsel %vm430, %v821, %v831
      %v854 = vsel %vm430, %v820, %v832
      %v855 = vld [vmem:[%s5] sm:$0xff]
      %v856 = vld [vmem:[%s5 + $0x8] sm:$0x1]
      %858 = vset.pattern.permute.xlu0 0
      %859 = vperm.xlu0 %858, %v855
      %v860 = vpop.permute.xlu0 %859
      %863 = vset.pattern.permute.xlu0 0
      %864 = vperm.xlu0 %863, %v856
      %v865 = vpop.permute.xlu0 %864
      %879 = vrot.lane.b32.xlu0 %v843, 17
      %v880 = vpop.permute.xlu0 %879
      %881 = vrot.lane.b32.xlu0 %v844, 17
      %v882 = vpop.permute.xlu0 %881
      %883 = vrot.lane.b32.xlu0 %v845, 17
      %v884 = vpop.permute.xlu0 %883
      %885 = vrot.lane.b32.xlu0 %v846, 17
      %v886 = vpop.permute.xlu0 %885
      %887 = vrot.lane.b32.xlu0 %v847, 17
      %v888 = vpop.permute.xlu0 %887
      %889 = vrot.lane.b32.xlu0 %v848, 17
      %v890 = vpop.permute.xlu0 %889
      %891 = vrot.lane.b32.xlu0 %v849, 17
      %v892 = vpop.permute.xlu0 %891
      %893 = vrot.lane.b32.xlu0 %v850, 17
      %v894 = vpop.permute.xlu0 %893
      %895 = vrot.lane.b32.xlu0 %v851, 17
      %v896 = vpop.permute.xlu0 %895
      %897 = vrot.lane.b32.xlu0 %v852, 17
      %v898 = vpop.permute.xlu0 %897
      %899 = vrot.lane.b32.xlu0 %v853, 17
      %v900 = vpop.permute.xlu0 %899
      %901 = vrot.lane.b32.xlu0 %v854, 17
      %v902 = vpop.permute.xlu0 %901
      %903 = vrot.lane.b32.xlu0 %v839, 17
      %v904 = vpop.permute.xlu0 %903
      %905 = vrot.lane.b32.xlu0 %v842, 17
      %v906 = vpop.permute.xlu0 %905
      %907 = vrot.lane.b32.xlu0 %v841, 17
      %v908 = vpop.permute.xlu0 %907
      %v909 = vsel %vm608, %v880, %v882
      %v910 = vsel %vm608, %v882, %v884
      %v911 = vsel %vm608, %v886, %v888
      %v912 = vsel %vm608, %v888, %v890
      %v913 = vsel %vm608, %v892, %v894
      %v914 = vsel %vm608, %v894, %v896
      %v915 = vsel %vm608, %v898, %v900
      %v916 = vsel %vm608, %v900, %v902
      %v917 = vsel %vm608, %v904, %v906
      %v918 = vsel %vm608, %v906, %v908
      %v928 = vsel %vm627, %v713, 0
      %v931 = vsel %vm627, %v714, 0
      %v933 = vsel %vm430, %v917, 0
      %v935 = vsel %vm430, %v918, 0
      %937 = vmatprep.subr.mxu0 %v910
      %938 = vmatpush1.msra.mxu0 %v909
      %939 = vmatprep.subr.mxu0 %v912
      %940 = vmatpush1.msra.mxu0 %v911
      %941 = vmatprep.subr.mxu0 %v914
      %942 = vmatpush1.msra.mxu0 %v913
      %943 = vmatprep.subr.mxu0 %v916
      %944 = vmatpush1.msra.mxu0 %v915
      %945 = vmatprep.subr.mxu0 %v935
      %946 = vmatpush1.msra.mxu0 %v933
      %947 = vmatprep.subr.mxu0 0.0
      %948 = vmatpush1.msra.mxu0 0.0
      %949 = vmatprep.subr.mxu0 0.0
      %950 = vmatpush1.msra.mxu0 0.0
      %951 = vmatprep.subr.mxu0 0.0
      %952 = vmatpush1.msra.mxu0 0.0
      %953 = vmatprep.subr.mxu0 0.0
      %954 = vmatpush1.msra.mxu0 0.0
      %955 = vmatprep.subr.mxu0 0.0
      %956 = vmatpush1.msra.mxu0 0.0
      %957 = vmatprep.subr.mxu0 0.0
      %958 = vmatpush1.msra.mxu0 0.0
      %959 = vmatprep.subr.mxu0 0.0
      %960 = vmatpush1.msra.mxu0 0.0
      %961 = vmatprep.subr.mxu0 0.0
      %962 = vmatpush1.msra.mxu0 0.0
      %963 = vmatprep.subr.mxu0 0.0
      %964 = vmatpush1.msra.mxu0 0.0
      %965 = vmatprep.subr.mxu0 0.0
      %966 = vmatpush1.msra.mxu0 0.0
      %967 = vmatprep.subr.mxu0 0.0
      %968 = vmatpush1.msra.mxu0 0.0
      %969 = vmatprep.subr.mxu0 0.0
      %970 = vmatpush1.msra.mxu0 0.0
      %971 = vmatprep.subr.mxu0 0.0
      %972 = vmatpush1.msra.mxu0 0.0
      %973 = vmatprep.subr.mxu0 0.0
      %974 = vmatpush1.msra.mxu0 0.0
      %975 = vmatprep.subr.mxu0 0.0
      %976 = vmatpush1.msra.mxu0 0.0
      %977 = vmatprep.subr.mxu0 0.0
      %978 = vmatpush1.msra.mxu0 0.0
      %979 = vmatprep.subr.mxu0 0.0
      %980 = vmatpush1.msra.mxu0 0.0
      %981 = vmatprep.subr.mxu0 0.0
      %982 = vmatpush1.msra.mxu0 0.0
      %983 = vmatprep.subr.mxu0 0.0
      %984 = vmatpush1.msra.mxu0 0.0
      %985 = vmatprep.subr.mxu0 0.0
      %986 = vmatpush1.msra.mxu0 0.0
      %987 = vmatprep.subr.mxu0 0.0
      %988 = vmatpush1.msra.mxu0 0.0
      %989 = vmatprep.subr.mxu0 0.0
      %990 = vmatpush1.msra.mxu0 0.0
      %991 = vmatprep.subr.mxu0 0.0
      %992 = vmatpush1.msra.mxu0 0.0
      %993 = vmatprep.subr.mxu0 0.0
      %994 = vmatpush1.msra.mxu0 0.0
      %995 = vmatprep.subr.mxu0 0.0
      %996 = vmatpush1.msra.mxu0 0.0
      %997 = vmatprep.subr.mxu0 0.0
      %998 = vmatpush1.msra.mxu0 0.0
      %999 = vmatprep.subr.mxu0 0.0
      %1000 = vmatpush1.msra.mxu0 0.0
      %1001 = vmatprep.mubr.f32.mxu0 0.0
      %1002 = vmatmul.mubr.f32.gmra.mrb[0].mxu0 %v928
      %v1003 = vpop.f32.mrb[0].mxu0
      %v1004 = vadd.f32 %v860, %v1003
      %v1005 = vpop.f32.mrb[0].mxu0
      %v1006 = vadd.f32 %v860, %v1005
      %1007 = vmatprep.mubr.f32.mxu0 0.0
      %1008 = vmatmul.mubr.f32.gmra.mrb[0].mxu0 %v931
      %v1009 = vpop.f32.mrb[0].mxu0
      %v1010 = vadd.f32 %v865, %v1009
      %v1011 = vpop.f32.mrb[0].mxu0
      %v1012 = vadd.f32 %v865, %v1011
      %1013 = vdwg.mxu0
      %v1014 = vmax.f32 %v1004, 0.0
      %v1015 = vmax.f32 %v1006, 0.0
      %v1016 = vmax.f32 %v1010, 0.0
      %v1017 = vmax.f32 %v1012, 0.0
      %v1018 = vld [vmem:[%s6] sm:$0xff]
      %v1019 = vld [vmem:[%s6 + $0x8] sm:$0x1]
      %v1020 = vld [vmem:[%s7] sm:$0xff]
      %v1021 = vld [vmem:[%s7 + $0x8] sm:$0x1]
      %1023 = vset.pattern.permute.xlu0 0
      %1024 = vperm.xlu0 %1023, %v1020
      %v1025 = vpop.permute.xlu0 %1024
      %1028 = vset.pattern.permute.xlu0 0
      %1029 = vperm.xlu0 %1028, %v1021
      %v1030 = vpop.permute.xlu0 %1029
      %vm1032 = vcmask 72704
      %v1034 = vsel %vm1032, %v1018, 0
      %v1037 = vsel %vm1032, %v1019, 0
      %vm1039 = vcmask 1040384
      %v1041 = vsel %vm1039, %v1016, 0
      %v1044 = vsel %vm1039, %v1017, 0
      %1046 = vmatprep.subr.mxu0 %v1015
      %1047 = vmatpush1.msra.mxu0 %v1014
      %1048 = vmatprep.subr.mxu0 %v1044
      %1049 = vmatpush1.msra.mxu0 %v1041
      %1050 = vmatprep.subr.mxu0 0.0
      %1051 = vmatpush1.msra.mxu0 0.0
      %1052 = vmatprep.subr.mxu0 0.0
      %1053 = vmatpush1.msra.mxu0 0.0
      %1054 = vmatprep.subr.mxu0 0.0
      %1055 = vmatpush1.msra.mxu0 0.0
      %1056 = vmatprep.subr.mxu0 0.0
      %1057 = vmatpush1.msra.mxu0 0.0
      %1058 = vmatprep.subr.mxu0 0.0
      %1059 = vmatpush1.msra.mxu0 0.0
      %1060 = vmatprep.subr.mxu0 0.0
      %1061 = vmatpush1.msra.mxu0 0.0
      %1062 = vmatprep.subr.mxu0 0.0
      %1063 = vmatpush1.msra.mxu0 0.0
      %1064 = vmatprep.subr.mxu0 0.0
      %1065 = vmatpush1.msra.mxu0 0.0
      %1066 = vmatprep.subr.mxu0 0.0
      %1067 = vmatpush1.msra.mxu0 0.0
      %1068 = vmatprep.subr.mxu0 0.0
      %1069 = vmatpush1.msra.mxu0 0.0
      %1070 = vmatprep.subr.mxu0 0.0
      %1071 = vmatpush1.msra.mxu0 0.0
      %1072 = vmatprep.subr.mxu0 0.0
      %1073 = vmatpush1.msra.mxu0 0.0
      %1074 = vmatprep.subr.mxu0 0.0
      %1075 = vmatpush1.msra.mxu0 0.0
      %1076 = vmatprep.subr.mxu0 0.0
      %1077 = vmatpush1.msra.mxu0 0.0
      %1078 = vmatprep.subr.mxu0 0.0
      %1079 = vmatpush1.msra.mxu0 0.0
      %1080 = vmatprep.subr.mxu0 0.0
      %1081 = vmatpush1.msra.mxu0 0.0
      %1082 = vmatprep.subr.mxu0 0.0
      %1083 = vmatpush1.msra.mxu0 0.0
      %1084 = vmatprep.subr.mxu0 0.0
      %1085 = vmatpush1.msra.mxu0 0.0
      %1086 = vmatprep.subr.mxu0 0.0
      %1087 = vmatpush1.msra.mxu0 0.0
      %1088 = vmatprep.subr.mxu0 0.0
      %1089 = vmatpush1.msra.mxu0 0.0
      %1090 = vmatprep.subr.mxu0 0.0
      %1091 = vmatpush1.msra.mxu0 0.0
      %1092 = vmatprep.subr.mxu0 0.0
      %1093 = vmatpush1.msra.mxu0 0.0
      %1094 = vmatprep.subr.mxu0 0.0
      %1095 = vmatpush1.msra.mxu0 0.0
      %1096 = vmatprep.subr.mxu0 0.0
      %1097 = vmatpush1.msra.mxu0 0.0
      %1098 = vmatprep.subr.mxu0 0.0
      %1099 = vmatpush1.msra.mxu0 0.0
      %1100 = vmatprep.subr.mxu0 0.0
      %1101 = vmatpush1.msra.mxu0 0.0
      %1102 = vmatprep.subr.mxu0 0.0
      %1103 = vmatpush1.msra.mxu0 0.0
      %1104 = vmatprep.subr.mxu0 0.0
      %1105 = vmatpush1.msra.mxu0 0.0
      %1106 = vmatprep.subr.mxu0 0.0
      %1107 = vmatpush1.msra.mxu0 0.0
      %1108 = vmatprep.subr.mxu0 0.0
      %1109 = vmatpush1.msra.mxu0 0.0
      %1110 = vmatprep.mubr.f32.mxu0 0.0
      %1111 = vmatmul.mubr.f32.gmra.mrb[0].mxu0 %v1034
      %v1112 = vpop.f32.mrb[0].mxu0
      %v1113 = vadd.f32 %v1025, %v1112
      %v1114 = vpop.f32.mrb[0].mxu0
      %v1115 = vadd.f32 %v1025, %v1114
      %1116 = vmatprep.mubr.f32.mxu0 0.0
      %1117 = vmatmul.mubr.f32.gmra.mrb[0].mxu0 %v1037
      %v1118 = vpop.f32.mrb[0].mxu0
      %v1119 = vadd.f32 %v1030, %v1118
      %v1120 = vpop.f32.mrb[0].mxu0
      %v1121 = vadd.f32 %v1030, %v1120
      %1122 = vdwg.mxu0
      %v1123 = vld [vmem:[%s314] sm:$0xff]
      %v1125 = vcombine.high %v1123, %v1123
      %v1127 = vsel %vm430, %v1123, 0.0
      %v1128 = vrot.slane %v1127, 4
      %v1129 = vadd.f32 %v1127, %v1128
      %v1130 = vrot.slane %v1129, 2
      %v1131 = vadd.f32 %v1129, %v1130
      %v1132 = vrot.slane %v1131, 1
      %v1133 = vadd.f32 %v1131, %v1132
      %v1134 = vsel %vm430, %v1125, 0.0
      %v1135 = vrot.slane %v1134, 4
      %v1136 = vadd.f32 %v1134, %v1135
      %v1137 = vrot.slane %v1136, 2
      %v1138 = vadd.f32 %v1136, %v1137
      %v1139 = vrot.slane %v1138, 1
      %v1140 = vadd.f32 %v1138, %v1139
      %v1143 = vcombine.low %v1133, %v1140
      %v1145 = vunpack.c.l.s4 1966171168
      %v1146 = vunpack.c.0.s8 %v1145
      %v1147 = vlaneseq
      %v1148 = vshrl.u32 %v1147, 7
      %v1149 = vsub.s32 %v1146, %v1148
      %v1150 = vrot.slane %v1143, %v1149
      %v1152 = vunpack.c.l.s4 1966171168
      %v1153 = vunpack.c.0.s8 %v1152
      %v1154 = vlaneseq
      %v1155 = vshrl.u32 %v1154, 7
      %v1156 = vsub.s32 %v1153, %v1155
      %v1157 = vrot.slane %v1150, %v1156
      %vm1159 = vcmp.lt.s32.totalorder %v379, 256
      %vm1160 = vmand %vm380, %vm1159
      %1161 = vst.msk [vmem:[#allocation4 + $0x1] sm:$0x3] %vm1160, %v1157
      %v1162 = vld [vmem:[#allocation4] sm:$0xf]
      %v1164 = vunpack.c.l.s4 1966171168
      %v1165 = vunpack.c.0.s8 %v1164
      %v1166 = vlaneseq
      %v1167 = vshrl.u32 %v1166, 7
      %v1168 = vsub.s32 %v1165, %v1167
      %v1169 = vrot.slane %v391, %v1168
      %v1171 = vunpack.c.l.s4 1966171168
      %v1172 = vunpack.c.0.s8 %v1171
      %v1173 = vlaneseq
      %v1174 = vshrl.u32 %v1173, 7
      %v1175 = vsub.s32 %v1172, %v1174
      %v1176 = vrot.slane %v1169, %v1175
      %1177 = vrot.lane.b32.xlu0 %v1176, 111
      %v1178 = vpop.permute.xlu0 %1177
      %v1179 = vrot.slane %v1178, 7
      %v1180 = vsel %vm395, %v1179, %v1178
      %v1182 = vmul.f32 %v1162, %v1180
      %v1184 = vunpack.c.l.s4 1966171168
      %v1185 = vunpack.c.0.s8 %v1184
      %v1186 = vlaneseq
      %v1187 = vshrl.u32 %v1186, 7
      %v1188 = vsub.s32 %v1185, %v1187
      %v1189 = vrot.slane %v403, %v1188
      %v1191 = vunpack.c.l.s4 1966171168
      %v1192 = vunpack.c.0.s8 %v1191
      %v1193 = vlaneseq
      %v1194 = vshrl.u32 %v1193, 7
      %v1195 = vsub.s32 %v1192, %v1194
      %v1196 = vrot.slane %v1189, %v1195
      %1197 = vrot.lane.b32.xlu0 %v1196, 113
      %v1198 = vpop.permute.xlu0 %1197
      %v1199 = vrot.slane %v1198, 7
      %v1200 = vsel %vm407, %v1199, %v1198
      %v1202 = vmul.f32 %v1162, %v1200
      %1203 = vrot.lane.b32.xlu0 %v1176, 127
      %v1204 = vpop.permute.xlu0 %1203
      %v1205 = vrot.slane %v1204, 7
      %v1206 = vsel %vm416, %v1205, %v1204
      %v1208 = vmul.f32 %v1162, %v1206
      %1210 = vrot.lane.b32.xlu0 %v1162, 127
      %v1211 = vpop.permute.xlu0 %1210
      %v1212 = vrot.slane %v1211, 1
      %v1213 = vrot.slane %v1211, 2
      %v1214 = vsel %vm416, %v1212, %v1213
      %v1217 = vmul.f32 %v1214, %v1196
      %1218 = vrot.lane.b32.xlu0 %v1162, 113
      %v1219 = vpop.permute.xlu0 %1218
      %v1220 = vrot.slane %v1219, 1
      %v1221 = vrot.slane %v1219, 2
      %v1222 = vsel %vm407, %v1220, %v1221
      %v1225 = vmul.f32 %v1222, %v1176
      %1226 = vrot.lane.b32.xlu0 %v1162, 111
      %v1227 = vpop.permute.xlu0 %1226
      %v1228 = vrot.slane %v1227, 1
      %v1229 = vrot.slane %v1227, 2
      %v1230 = vsel %vm395, %v1228, %v1229
      %v1232 = vmul.f32 %v1230, %v1196
      %v1234 = vlaneseq
      %v1235 = vshrl.u32 %v1234, 7
      %v1236 = vsub.s32 0, %v1235
      %v1237 = vrot.slane %v1182, %v1236
      %v1238 = vlaneseq
      %v1239 = vshrl.u32 %v1238, 7
      %v1240 = vsub.s32 1, %v1239
      %v1241 = vrot.slane %v1182, %v1240
      %v1242 = vlaneseq
      %v1243 = vshrl.u32 %v1242, 7
      %v1244 = vsub.s32 2, %v1243
      %v1245 = vrot.slane %v1182, %v1244
      %v1249 = vlaneseq
      %v1250 = vshrl.u32 %v1249, 7
      %v1251 = vsub.s32 0, %v1250
      %v1252 = vrot.slane %v1162, %v1251
      %v1253 = vlaneseq
      %v1254 = vshrl.u32 %v1253, 7
      %v1255 = vsub.s32 1, %v1254
      %v1256 = vrot.slane %v1162, %v1255
      %v1257 = vlaneseq
      %v1258 = vshrl.u32 %v1257, 7
      %v1259 = vsub.s32 2, %v1258
      %v1260 = vrot.slane %v1162, %v1259
      %1261 = vrot.lane.b32.xlu0 %v1252, 127
      %v1262 = vpop.permute.xlu0 %1261
      %1263 = vrot.lane.b32.xlu0 %v1256, 127
      %v1264 = vpop.permute.xlu0 %1263
      %1265 = vrot.lane.b32.xlu0 %v1260, 127
      %v1266 = vpop.permute.xlu0 %1265
      %v1267 = vsel %vm416, %v1262, %v1264
      %v1268 = vsel %vm416, %v1264, %v1266
      %v1273 = vlaneseq
      %v1274 = vshrl.u32 %v1273, 7
      %v1275 = vsub.s32 0, %v1274
      %v1276 = vrot.slane %v1202, %v1275
      %v1277 = vlaneseq
      %v1278 = vshrl.u32 %v1277, 7
      %v1279 = vsub.s32 1, %v1278
      %v1280 = vrot.slane %v1202, %v1279
      %v1281 = vlaneseq
      %v1282 = vshrl.u32 %v1281, 7
      %v1283 = vsub.s32 2, %v1282
      %v1284 = vrot.slane %v1202, %v1283
      %1285 = vrot.lane.b32.xlu0 %v1276, 126
      %v1286 = vpop.permute.xlu0 %1285
      %1287 = vrot.lane.b32.xlu0 %v1280, 126
      %v1288 = vpop.permute.xlu0 %1287
      %1289 = vrot.lane.b32.xlu0 %v1284, 126
      %v1290 = vpop.permute.xlu0 %1289
      %v1291 = vsel %vm480, %v1286, %v1288
      %v1292 = vsel %vm480, %v1288, %v1290
      %v1297 = vlaneseq
      %v1298 = vshrl.u32 %v1297, 7
      %v1299 = vsub.s32 0, %v1298
      %v1300 = vrot.slane %v1208, %v1299
      %v1301 = vlaneseq
      %v1302 = vshrl.u32 %v1301, 7
      %v1303 = vsub.s32 1, %v1302
      %v1304 = vrot.slane %v1208, %v1303
      %v1305 = vlaneseq
      %v1306 = vshrl.u32 %v1305, 7
      %v1307 = vsub.s32 2, %v1306
      %v1308 = vrot.slane %v1208, %v1307
      %1309 = vrot.lane.b32.xlu0 %v1300, 112
      %v1310 = vpop.permute.xlu0 %1309
      %1311 = vrot.lane.b32.xlu0 %v1304, 112
      %v1312 = vpop.permute.xlu0 %1311
      %1313 = vrot.lane.b32.xlu0 %v1308, 112
      %v1314 = vpop.permute.xlu0 %1313
      %v1315 = vsel %vm496, %v1310, %v1312
      %v1316 = vsel %vm496, %v1312, %v1314
      %1320 = vrot.lane.b32.xlu0 %v1256, 111
      %v1321 = vpop.permute.xlu0 %1320
      %1322 = vrot.lane.b32.xlu0 %v1260, 111
      %v1323 = vpop.permute.xlu0 %1322
      %v1324 = vsel %vm395, %v1321, %v1323
      %v1329 = vlaneseq
      %v1330 = vshrl.u32 %v1329, 7
      %v1331 = vsub.s32 0, %v1330
      %v1332 = vrot.slane %v1217, %v1331
      %v1333 = vlaneseq
      %v1334 = vshrl.u32 %v1333, 7
      %v1335 = vsub.s32 1, %v1334
      %v1336 = vrot.slane %v1217, %v1335
      %1337 = vrot.lane.b32.xlu0 %v1332, 111
      %v1338 = vpop.permute.xlu0 %1337
      %1339 = vrot.lane.b32.xlu0 %v1336, 111
      %v1340 = vpop.permute.xlu0 %1339
      %v1341 = vsel %vm395, %v1338, %v1340
      %v1346 = vlaneseq
      %v1347 = vshrl.u32 %v1346, 7
      %v1348 = vsub.s32 0, %v1347
      %v1349 = vrot.slane %v1225, %v1348
      %v1350 = vlaneseq
      %v1351 = vshrl.u32 %v1350, 7
      %v1352 = vsub.s32 1, %v1351
      %v1353 = vrot.slane %v1225, %v1352
      %1354 = vrot.lane.b32.xlu0 %v1349, 111
      %v1355 = vpop.permute.xlu0 %1354
      %1356 = vrot.lane.b32.xlu0 %v1353, 111
      %v1357 = vpop.permute.xlu0 %1356
      %v1358 = vsel %vm395, %v1355, %v1357
      %v1362 = vlaneseq
      %v1363 = vshrl.u32 %v1362, 7
      %v1364 = vsub.s32 3, %v1363
      %v1365 = vrot.slane %v1162, %v1364
      %1366 = vrot.lane.b32.xlu0 %v1256, 95
      %v1367 = vpop.permute.xlu0 %1366
      %1368 = vrot.lane.b32.xlu0 %v1260, 95
      %v1369 = vpop.permute.xlu0 %1368
      %1370 = vrot.lane.b32.xlu0 %v1365, 95
      %v1371 = vpop.permute.xlu0 %1370
      %v1372 = vsel %vm535, %v1367, %v1369
      %v1373 = vsel %vm535, %v1369, %v1371
      %v1378 = vlaneseq
      %v1379 = vshrl.u32 %v1378, 7
      %v1380 = vsub.s32 0, %v1379
      %v1381 = vrot.slane %v1232, %v1380
      %v1382 = vlaneseq
      %v1383 = vshrl.u32 %v1382, 7
      %v1384 = vsub.s32 1, %v1383
      %v1385 = vrot.slane %v1232, %v1384
      %1386 = vrot.lane.b32.xlu0 %v1381, 111
      %v1387 = vpop.permute.xlu0 %1386
      %1388 = vrot.lane.b32.xlu0 %v1385, 111
      %v1389 = vpop.permute.xlu0 %1388
      %v1390 = vsel %vm395, %v1387, %v1389
      %v1391 = vsel %vm1039, %v1237, %v1267
      %v1392 = vsel %vm1039, %v1241, %v1268
      %v1393 = vsel %vm1039, %v1245, %v1266
      %vm1394 = vcmask 1041408
      %v1395 = vsel %vm1394, %v1391, %v1291
      %v1396 = vsel %vm1394, %v1392, %v1292
      %v1397 = vsel %vm1394, %v1393, %v1290
      %vm1398 = vcmask 1042432
      %v1399 = vsel %vm1398, %v1395, %v1315
      %v1400 = vsel %vm1398, %v1396, %v1316
      %v1401 = vsel %vm1398, %v1397, %v1314
      %v1402 = vsel %vm430, %v1399, %v1321
      %v1403 = vsel %vm430, %v1400, %v1324
      %v1404 = vsel %vm430, %v1401, %v1323
      %vm1405 = vcmask 1044480
      %v1406 = vsel %vm1405, %v1402, %v1338
      %v1407 = vsel %vm1405, %v1403, %v1341
      %v1408 = vsel %vm1405, %v1404, %v1340
      %vm1409 = vcmask 1045504
      %v1410 = vsel %vm1409, %v1406, %v1355
      %v1411 = vsel %vm1409, %v1407, %v1358
      %v1412 = vsel %vm1409, %v1408, %v1357
      %vm1413 = vcmask 1046528
      %v1414 = vsel %vm1413, %v1410, %v1367
      %v1415 = vsel %vm1413, %v1411, %v1372
      %v1416 = vsel %vm1413, %v1412, %v1373
      %1420 = vrot.lane.b32.xlu0 %v1414, 17
      %v1421 = vpop.permute.xlu0 %1420
      %1422 = vrot.lane.b32.xlu0 %v1415, 17
      %v1423 = vpop.permute.xlu0 %1422
      %1424 = vrot.lane.b32.xlu0 %v1416, 17
      %v1425 = vpop.permute.xlu0 %1424
      %1426 = vrot.lane.b32.xlu0 %v1387, 17
      %v1427 = vpop.permute.xlu0 %1426
      %1428 = vrot.lane.b32.xlu0 %v1390, 17
      %v1429 = vpop.permute.xlu0 %1428
      %1430 = vrot.lane.b32.xlu0 %v1389, 17
      %v1431 = vpop.permute.xlu0 %1430
      %v1432 = vsel %vm608, %v1421, %v1423
      %v1433 = vsel %vm608, %v1423, %v1425
      %v1434 = vsel %vm608, %v1427, %v1429
      %v1435 = vsel %vm608, %v1429, %v1431
      %v1440 = vmul.f32 %v1113, %v1432
      %v1441 = vmul.f32 %v1115, %v1433
      %v1442 = vmul.f32 %v1119, %v1434
      %v1443 = vmul.f32 %v1121, %v1435
      %v1444 = vsel %vm1039, %v1442, 0.0
      %v1445 = vadd.f32 %v1440, %v1444
      %v1446 = vrot.slane %v1445, 4
      %v1447 = vadd.f32 %v1445, %v1446
      %v1448 = vrot.slane %v1447, 2
      %v1449 = vadd.f32 %v1447, %v1448
      %v1450 = vrot.slane %v1449, 1
      %v1451 = vadd.f32 %v1449, %v1450
      %v1452 = vsel %vm1039, %v1443, 0.0
      %v1453 = vadd.f32 %v1441, %v1452
      %v1454 = vrot.slane %v1453, 4
      %v1455 = vadd.f32 %v1453, %v1454
      %v1456 = vrot.slane %v1455, 2
      %v1457 = vadd.f32 %v1455, %v1456
      %v1458 = vrot.slane %v1457, 1
      %v1459 = vadd.f32 %v1457, %v1458
      %v1462 = vcombine.low %v1451, %v1459
      %v1464 = vunpack.c.l.s4 1966171168
      %v1465 = vunpack.c.0.s8 %v1464
      %v1466 = vlaneseq
      %v1467 = vshrl.u32 %v1466, 7
      %v1468 = vsub.s32 %v1465, %v1467
      %v1469 = vrot.slane %v1462, %v1468
      %v1471 = vunpack.c.l.s4 1966171168
      %v1472 = vunpack.c.0.s8 %v1471
      %v1473 = vlaneseq
      %v1474 = vshrl.u32 %v1473, 7
      %v1475 = vsub.s32 %v1472, %v1474
      %v1476 = vrot.slane %v1469, %v1475
      %1478 = vst.msk [vmem:[%s323] sm:$0x3] %vm1160, %v1476
      %p1479 = scmp.lt.s32.totalorder %s19, 1
      %s1480 = scalar_select %p1479, %s19, 1
      %s1481 = smul.addr %s1480, 2
      %s1482 = scalar_lea.vmem %s8, %s1481
      // Predicated region
      $region53: #{kpn_forward.1} parent=51 // pred_check
        %p1483 = pneg %p215
      $region54: #{kpn_forward.1} parent=51 // pred_check_branch
        %1485 = sbr.rel (%p1483) target = $region56
      $region55: #{kpn_forward.1} parent=51 // pred_region
        _
      $region56: #{kpn_forward.1} parent=51 // pred_fallthru
        _
    $region52: #{kpn_forward.1} parent=5 // pred_fallthru
      _
    %p1486 = scmp.le.s32.totalorder 2, %s14
    // Predicated region
    $region57: #{kpn_forward.1} parent=5 // pred_check
      %p1487 = pneg %p1486
    $region58: #{kpn_forward.1} parent=5 // pred_check_branch
      %1489 = sbr.rel (%p1487) target = $region60
    $region59: #{kpn_forward.1} parent=5 // pred_region
      %s1490 = ssub.s32 %s14, 2
      // Predicated region
      $region61: #{kpn_forward.1} parent=59 // pred_check
        %p1491 = pneg %p221
      $region62: #{kpn_forward.1} parent=59 // pred_check_branch
        %1493 = sbr.rel (%p1491) target = $region64
      $region63: #{kpn_forward.1} parent=59 // pred_region
        %p1494 = scmp.lt.s32.totalorder %s20, 1
        %s1495 = scalar_select %p1494, %s20, 1
        %s1496 = smul.addr %s1495, 2
        %s1497 = scalar_lea.vmem %s8, %s1496
      $region64: #{kpn_forward.1} parent=59 // pred_fallthru
        _
    $region60: #{kpn_forward.1} parent=5 // pred_fallthru
      _
  $region6: #{kpn_forward.1} parent=0 // loop_footer
    %s18 = sadd.s32 1, %s14
  $region7: #{kpn_forward.1} parent=0 // loop_footer_branch
    %13 = sbr.rel target = $region3
  $region8: #{kpn_forward.1} parent=0 // loop_exit
    _

</llo_original>
